<compile_context>
chip_gen: v7x
topology: tpu7x:2x2x1
jax: 0.10.0
libtpu: 0.0.40
codegen_flags: <defaults>
</compile_context>

<pallas_src>
import functools

import jax
import jax.numpy as jnp
from jax.experimental import pallas as pl
from jax.experimental.pallas import tpu as pltpu


# ----------------------------------------------------------------------------
# Fused kernel: grid = (batch_tiles, n_layers + 1).
#   l == 0            : initial conv + BN + ReLU (from the input tile)
#   l in [1, n_layers]: residual block l-1 (two convs)
# Activation persists across layer steps in VMEM scratch.
# ----------------------------------------------------------------------------
def _resnet_kernel(x_ref, w_ref, s_ref, b_ref, o_ref, apad_ref, res_ref,
                   *, K, S, Cin, Cp, n_layers, lead):
    pad = K // 2
    bt = x_ref.shape[0]
    l = pl.program_id(1)

    def conv_bn(j):
        # K per-tap matmuls (bf16 operands, f32 accumulate) — no im2col copy.
        acc = None
        for k in range(K):
            r0 = lead - pad + k
            win = apad_ref[:, r0:r0 + S, :].reshape(bt * S, Cp)   # bf16
            y = jnp.dot(win, w_ref[0, j, k],
                        preferred_element_type=jnp.float32)
            acc = y if acc is None else acc + y
        return acc * s_ref[0, j] + b_ref[0, j]                    # (bt*S, Cp) f32

    def store_act(a_f32):
        # f32 copy feeds next layer's residual; bf16 copy feeds next conv.
        res_ref[...] = a_f32

        @pl.when(l < n_layers)
        def _():
            apad_ref[:, lead:lead + S, :] = (
                a_f32.reshape(bt, S, Cp).astype(jnp.bfloat16))

    @pl.when(l == 0)
    def _():
        # Zero pad rows + padded channels once per batch tile, place input.
        apad_ref[...] = jnp.zeros(apad_ref.shape, apad_ref.dtype)
        xb = x_ref[...].astype(jnp.bfloat16)
        if Cp > Cin:
            xb = jnp.concatenate(
                [xb, jnp.zeros((bt, S, Cp - Cin), jnp.bfloat16)], axis=-1)
        apad_ref[:, lead:lead + S, :] = xb
        # initial conv -> BN -> ReLU
        store_act(jnp.maximum(conv_bn(0), 0.0))

    @pl.when(l > 0)
    def _():
        residual = res_ref[...]                       # previous activation, f32
        h1 = jnp.maximum(conv_bn(0), 0.0)
        apad_ref[:, lead:lead + S, :] = h1.reshape(bt, S, Cp).astype(jnp.bfloat16)
        h2 = conv_bn(1)
        store_act(jnp.maximum(h2 + residual, 0.0))

    @pl.when(l == n_layers)
    def _():
        o_ref[...] = res_ref[...].reshape(bt, S, Cp).astype(o_ref.dtype)


def _pick_batch_tile(B, S, Cp, K, pad, lead, budget=24 << 20):
    """Largest divisor of B fitting a per-step VMEM budget, preferring
    >= min(4, B) batch grid steps so double-buffering has work to hide."""
    def est(bt):
        wblk = 2 * (2 * K * Cp * Cp * 2)          # weights, double-buffered bf16
        xblk = 2 * (bt * S * Cp * 2)              # input block (upper bound)
        oblk = 2 * (bt * S * Cp * 2)              # output block, bf16
        scr = bt * (lead + S + pad) * Cp * 2 + bt * S * Cp * 4
        live = 3 * bt * S * Cp * 4                # live f32 activation copies
        return wblk + xblk + oblk + scr + live

    divisors = [d for d in range(B, 0, -1) if B % d == 0]
    want_steps = min(4, B)
    fallback = None
    for d in divisors:
        if est(d) > budget:
            continue
        if fallback is None:
            fallback = d
        if B // d >= want_steps:
            return d
    return fallback if fallback is not None else 1


def resnet_forward(params, x, *, batch_tile=None):
    """x: (B, S, in_channels) channels-last.  Returns (B, S, out_channels) f32."""
    B, S, Cin = x.shape
    w0 = params['conv0_w']
    K, _, Cout = w0.shape
    assert K % 2 == 1, "conv1D spec requires odd kernel_size (same-length pad)"
    pad = K // 2
    lead = ((pad + 7) // 8) * 8                    # sublane-aligned interior start
    n_layers = params['blocks_w'].shape[0]
    Cp = ((max(Cin, Cout) + 127) // 128) * 128     # lane-dense channel width

    # ---- weight prep: pad channels to Cp, stack per-layer for streaming ----
    def pad_to(a, shape):
        return jnp.zeros(shape, a.dtype).at[
            tuple(slice(0, d) for d in a.shape)].set(a)

    w0p = pad_to(w0, (K, Cp, Cp))
    wfirst = jnp.stack([w0p, jnp.zeros_like(w0p)])[None]        # (1,2,K,Cp,Cp)
    if n_layers > 0:
        wblk = pad_to(params['blocks_w'], (n_layers, 2, K, Cp, Cp))
        W = jnp.concatenate([wfirst, wblk], axis=0)
    else:
        W = wfirst
    W = W.astype(jnp.bfloat16)                                   # (L+1,2,K,Cp,Cp)

    def stack_affine(first, blocks):
        f = pad_to(first.reshape(1, Cout), (1, Cp))
        f = jnp.stack([f, jnp.zeros_like(f)])[None]              # (1,2,1,Cp)
        if n_layers > 0:
            b = pad_to(blocks, (n_layers, 2, 1, Cp))
            return jnp.concatenate([f, b], axis=0).astype(jnp.float32)
        return f.astype(jnp.float32)

    Sall = stack_affine(params['bn0_scale'], params['blocks_scale'])
    Ball = stack_affine(params['bn0_shift'], params['blocks_shift'])

    x_bf = x.astype(jnp.bfloat16)                 # unpadded input, half the DMA

    if batch_tile is None:
        batch_tile = _pick_batch_tile(B, S, Cp, K, pad, lead)
    nb = pl.cdiv(B, batch_tile)
    grid = (nb, n_layers + 1)

    flops = 2 * (2 * n_layers + 1) * B * S * K * Cp * Cp
    bytes_accessed = (x_bf.size * 2 + B * S * Cp * 2 + W.size * 2
                      + Sall.size * 4 + Ball.size * 4)

    kern = functools.partial(_resnet_kernel, K=K, S=S, Cin=Cin, Cp=Cp,
                             n_layers=n_layers, lead=lead)
    out = pl.pallas_call(
        kern,
        out_shape=jax.ShapeDtypeStruct((B, S, Cp), jnp.bfloat16),
        grid=grid,
        in_specs=[
            # input tile: resident across the layer axis (one DMA per batch tile)
            pl.BlockSpec((batch_tile, S, Cin), lambda b, l: (b, 0, 0)),
            # per-layer weights streamed along the (arbitrary) layer axis
            pl.BlockSpec((1, 2, K, Cp, Cp), lambda b, l: (l, 0, 0, 0, 0)),
            pl.BlockSpec((1, 2, 1, Cp), lambda b, l: (l, 0, 0, 0)),
            pl.BlockSpec((1, 2, 1, Cp), lambda b, l: (l, 0, 0, 0)),
        ],
        out_specs=pl.BlockSpec((batch_tile, S, Cp), lambda b, l: (b, 0, 0)),
        scratch_shapes=[
            # padded activation (bf16) used for conv window reads
            pltpu.VMEM((batch_tile, lead + S + pad, Cp), jnp.bfloat16),
            # f32 activation carried across layer steps (residual)
            pltpu.VMEM((batch_tile * S, Cp), jnp.float32),
        ],
        compiler_params=pltpu.CompilerParams(
            dimension_semantics=("parallel", "arbitrary"),
            vmem_limit_bytes=32 * 1024 * 1024),
        cost_estimate=pl.CostEstimate(
            flops=flops, transcendentals=0, bytes_accessed=int(bytes_accessed)),
    )(x_bf, W, Sall, Ball)

    return out[..., :Cout].astype(jnp.float32)


# ----------------------------------------------------------------------------
# Deterministic parameter construction (PyTorch __init__ shapes, BN folded)
# ----------------------------------------------------------------------------
def init_resnet_params(key, in_c, out_c, K, n_layers):
    keys = iter(jax.random.split(key, 128))
    nk = lambda: next(keys)

    def conv_w(cin, cout):
        return 0.1 * jax.random.normal(nk(), (K, cin, cout), jnp.float32)

    def bn_fold(c):
        gamma = 1.0 + 0.1 * jax.random.normal(nk(), (c,), jnp.float32)
        beta = 0.1 * jax.random.normal(nk(), (c,), jnp.float32)
        mean = 0.1 * jax.random.normal(nk(), (c,), jnp.float32)
        var = 1.0 + 0.1 * jnp.abs(jax.random.normal(nk(), (c,), jnp.float32))
        scale = gamma * jax.lax.rsqrt(var + 1e-5)
        shift = beta - mean * scale
        return scale.reshape(1, c), shift.reshape(1, c)

    p = {'conv0_w': conv_w(in_c, out_c)}
    p['bn0_scale'], p['bn0_shift'] = bn_fold(out_c)

    bw, bs, bh = [], [], []
    for _ in range(n_layers):
        w1 = conv_w(out_c, out_c); s1, h1 = bn_fold(out_c)
        w2 = conv_w(out_c, out_c); s2, h2 = bn_fold(out_c)
        bw.append(jnp.stack([w1, w2]))
        bs.append(jnp.stack([s1, s2]))
        bh.append(jnp.stack([h1, h2]))
    p['blocks_w'] = jnp.stack(bw)        # (n_layers, 2, K, out_c, out_c)
    p['blocks_scale'] = jnp.stack(bs)    # (n_layers, 2, 1, out_c)
    p['blocks_shift'] = jnp.stack(bh)    # (n_layers, 2, 1, out_c)
    return p


# ----------------------------------------------------------------------------
# Pure-JAX reference (f32) for correctness checking
# ----------------------------------------------------------------------------
def _resnet_reference(params, x):
    def conv_bn(a, w, scale, shift):
        K = w.shape[0]; pad = K // 2; S = a.shape[1]
        ap = jnp.pad(a, ((0, 0), (pad, pad), (0, 0)))
        y = sum(jnp.einsum('bsc,cd->bsd', ap[:, k:k + S, :], w[k])
                for k in range(K))
        return y * scale + shift

    act = jax.nn.relu(conv_bn(x, params['conv0_w'],
                              params['bn0_scale'], params['bn0_shift']))
    n_layers = params['blocks_w'].shape[0]
    for l in range(n_layers):
        res = act
        h = jax.nn.relu(conv_bn(act, params['blocks_w'][l, 0],
                                params['blocks_scale'][l, 0],
                                params['blocks_shift'][l, 0]))
        h = conv_bn(h, params['blocks_w'][l, 1],
                    params['blocks_scale'][l, 1],
                    params['blocks_shift'][l, 1])
        act = jax.nn.relu(h + res)
    return act


# ----------------------------------------------------------------------------
if __name__ == "__main__":
    B, S = 2, 16
    in_channels, out_channels, kernel_size, n_layers = 8, 16, 3, 4

    root = jax.random.PRNGKey(0)
    k_p, k_x = jax.random.split(root)
    params = init_resnet_params(k_p, in_channels, out_channels,
                                kernel_size, n_layers)
    x = jax.random.normal(k_x, (B, S, in_channels), jnp.float32)

    out = resnet_forward(params, x)
    out = jax.block_until_ready(out)

    assert out.shape == (B, S, out_channels), out.shape
    assert bool(jnp.all(jnp.isfinite(out)))

    ref = _resnet_reference(params, x)
    max_err = float(jnp.max(jnp.abs(out - ref)))
    tol = 5e-2 * (float(jnp.max(jnp.abs(ref))) + 1.0)   # bf16-operand tolerance
    assert max_err < tol, (max_err, tol)

    print("KERNEL_OK")
</pallas_src>

<mosaic_0001>
module attributes {stable_mosaic.version = 11 : i64} {
  func.func @_resnet_kernel(%arg0: i32, %arg1: i32, %arg2: memref<1x16x8xbf16, #tpu.memory_space<vmem>>, %arg3: memref<1x2x3x128x128xbf16, #tpu.memory_space<vmem>>, %arg4: memref<1x2x1x128xf32, #tpu.memory_space<vmem>>, %arg5: memref<1x2x1x128xf32, #tpu.memory_space<vmem>>, %arg6: memref<1x16x128xbf16, #tpu.memory_space<vmem>>, %arg7: memref<1x25x128xbf16, #tpu.memory_space<vmem>>, %arg8: memref<16x128xf32, #tpu.memory_space<vmem>>) attributes {dimension_semantics = [#tpu.dimension_semantics<parallel>, #tpu.dimension_semantics<arbitrary>], iteration_bounds = array<i64: 2, 5>, scalar_prefetch = 0 : i64, scratch_operands = 2 : i64, tpu.core_type = #tpu.core_type<tc>, window_params = [{transform_indices = @transform_0, window_bounds = array<i64: 1, 16, 8>}, {transform_indices = @transform_1, window_bounds = array<i64: 1, 2, 3, 128, 128>}, {transform_indices = @transform_2, window_bounds = array<i64: 1, 2, 1, 128>}, {transform_indices = @transform_3, window_bounds = array<i64: 1, 2, 1, 128>}, {transform_indices = @transform_4, window_bounds = array<i64: 1, 16, 128>}]} {
    %c0_i32 = arith.constant 0 : i32
    %0 = arith.cmpi eq, %arg1, %c0_i32 : i32
    %1 = arith.extui %0 : i1 to i32
    %c0_i32_0 = arith.constant 0 : i32
    %2 = arith.cmpi ne, %1, %c0_i32_0 : i32
    scf.if %2 {
      %cst = arith.constant 0.000000e+00 : bf16
      %9 = vector.broadcast %cst : bf16 to vector<1x25x128xbf16>
      %c0 = arith.constant 0 : index
      %c0_4 = arith.constant 0 : index
      %c0_5 = arith.constant 0 : index
      %10 = vector.load %arg7[%c0, %c0_4, %c0_5] : memref<1x25x128xbf16, #tpu.memory_space<vmem>>, vector<1x25x128xbf16>
      tpu.vector_store %arg7[%c0, %c0_4, %c0_5], %9 {strides = array<i32>} : memref<1x25x128xbf16, #tpu.memory_space<vmem>>, vector<1x25x128xbf16>,
      %c0_6 = arith.constant 0 : index
      %c0_7 = arith.constant 0 : index
      %c0_8 = arith.constant 0 : index
      %11 = vector.load %arg2[%c0_6, %c0_7, %c0_8] : memref<1x16x8xbf16, #tpu.memory_space<vmem>>, vector<1x16x8xbf16>
      %cst_9 = arith.constant 0.000000e+00 : bf16
      %12 = vector.broadcast %cst_9 : bf16 to vector<1x16x120xbf16>
      %13 = tpu.concatenate %11, %12 in 2 : vector<1x16x8xbf16>, vector<1x16x120xbf16> -> vector<1x16x128xbf16>
      %c0_10 = arith.constant 0 : index
      %c8 = arith.constant 8 : index
      %c0_11 = arith.constant 0 : index
      %14 = vector.load %arg7[%c0_10, %c8, %c0_11] : memref<1x25x128xbf16, #tpu.memory_space<vmem>>, vector<1x16x128xbf16>
      tpu.vector_store %arg7[%c0_10, %c8, %c0_11], %13 {strides = array<i32>} : memref<1x25x128xbf16, #tpu.memory_space<vmem>>, vector<1x16x128xbf16>,
      %c0_12 = arith.constant 0 : index
      %c7 = arith.constant 7 : index
      %c0_13 = arith.constant 0 : index
      %15 = vector.load %arg7[%c0_12, %c7, %c0_13] : memref<1x25x128xbf16, #tpu.memory_space<vmem>>, vector<1x16x128xbf16>
      %16 = vector.shape_cast %15 : vector<1x16x128xbf16> to vector<16x128xbf16>
      %c0_14 = arith.constant 0 : index
      %c0_15 = arith.constant 0 : index
      %c0_16 = arith.constant 0 : index
      %c0_17 = arith.constant 0 : index
      %c0_18 = arith.constant 0 : index
      %17 = vector.load %arg3[%c0_14, %c0_15, %c0_16, %c0_17, %c0_18] : memref<1x2x3x128x128xbf16, #tpu.memory_space<vmem>>, vector<1x1x1x128x128xbf16>
      %18 = vector.shape_cast %17 : vector<1x1x1x128x128xbf16> to vector<128x128xbf16>
      %cst_19 = arith.constant dense<0.000000e+00> : vector<16x128xf32>
      %19 = tpu.matmul %16, %18, %cst_19 {dimension_numbers = #tpu.dot_dimension_numbers<[1], [0], [0], [1], [0, 0, 1, 1], [], []>} : vector<16x128xbf16>, vector<128x128xbf16>, vector<16x128xf32> -> vector<16x128xf32>
      %c0_20 = arith.constant 0 : index
      %c8_21 = arith.constant 8 : index
      %c0_22 = arith.constant 0 : index
      %20 = vector.load %arg7[%c0_20, %c8_21, %c0_22] : memref<1x25x128xbf16, #tpu.memory_space<vmem>>, vector<1x16x128xbf16>
      %21 = vector.shape_cast %20 : vector<1x16x128xbf16> to vector<16x128xbf16>
      %c0_23 = arith.constant 0 : index
      %c0_24 = arith.constant 0 : index
      %c1 = arith.constant 1 : index
      %c0_25 = arith.constant 0 : index
      %c0_26 = arith.constant 0 : index
      %22 = vector.load %arg3[%c0_23, %c0_24, %c1, %c0_25, %c0_26] : memref<1x2x3x128x128xbf16, #tpu.memory_space<vmem>>, vector<1x1x1x128x128xbf16>
      %23 = vector.shape_cast %22 : vector<1x1x1x128x128xbf16> to vector<128x128xbf16>
      %cst_27 = arith.constant dense<0.000000e+00> : vector<16x128xf32>
      %24 = tpu.matmul %21, %23, %cst_27 {dimension_numbers = #tpu.dot_dimension_numbers<[1], [0], [0], [1], [0, 0, 1, 1], [], []>} : vector<16x128xbf16>, vector<128x128xbf16>, vector<16x128xf32> -> vector<16x128xf32>
      %25 = arith.addf %19, %24 : vector<16x128xf32>
      %c0_28 = arith.constant 0 : index
      %c9 = arith.constant 9 : index
      %c0_29 = arith.constant 0 : index
      %26 = vector.load %arg7[%c0_28, %c9, %c0_29] : memref<1x25x128xbf16, #tpu.memory_space<vmem>>, vector<1x16x128xbf16>
      %27 = vector.shape_cast %26 : vector<1x16x128xbf16> to vector<16x128xbf16>
      %c0_30 = arith.constant 0 : index
      %c0_31 = arith.constant 0 : index
      %c2 = arith.constant 2 : index
      %c0_32 = arith.constant 0 : index
      %c0_33 = arith.constant 0 : index
      %28 = vector.load %arg3[%c0_30, %c0_31, %c2, %c0_32, %c0_33] : memref<1x2x3x128x128xbf16, #tpu.memory_space<vmem>>, vector<1x1x1x128x128xbf16>
      %29 = vector.shape_cast %28 : vector<1x1x1x128x128xbf16> to vector<128x128xbf16>
      %cst_34 = arith.constant dense<0.000000e+00> : vector<16x128xf32>
      %30 = tpu.matmul %27, %29, %cst_34 {dimension_numbers = #tpu.dot_dimension_numbers<[1], [0], [0], [1], [0, 0, 1, 1], [], []>} : vector<16x128xbf16>, vector<128x128xbf16>, vector<16x128xf32> -> vector<16x128xf32>
      %31 = arith.addf %25, %30 : vector<16x128xf32>
      %c0_35 = arith.constant 0 : index
      %c0_36 = arith.constant 0 : index
      %c0_37 = arith.constant 0 : index
      %c0_38 = arith.constant 0 : index
      %32 = vector.load %arg4[%c0_35, %c0_36, %c0_37, %c0_38] : memref<1x2x1x128xf32, #tpu.memory_space<vmem>>, vector<1x1x1x128xf32>
      %33 = vector.shape_cast %32 : vector<1x1x1x128xf32> to vector<1x128xf32>
      %34 = vector.broadcast %33 : vector<1x128xf32> to vector<16x128xf32>
      %35 = arith.mulf %31, %34 : vector<16x128xf32>
      %c0_39 = arith.constant 0 : index
      %c0_40 = arith.constant 0 : index
      %c0_41 = arith.constant 0 : index
      %c0_42 = arith.constant 0 : index
      %36 = vector.load %arg5[%c0_39, %c0_40, %c0_41, %c0_42] : memref<1x2x1x128xf32, #tpu.memory_space<vmem>>, vector<1x1x1x128xf32>
      %37 = vector.shape_cast %36 : vector<1x1x1x128xf32> to vector<1x128xf32>
      %38 = vector.broadcast %37 : vector<1x128xf32> to vector<16x128xf32>
      %39 = arith.addf %35, %38 : vector<16x128xf32>
      %cst_43 = arith.constant 0.000000e+00 : f32
      %40 = vector.broadcast %cst_43 : f32 to vector<16x128xf32>
      %41 = arith.maximumf %39, %40 : vector<16x128xf32>
      %c0_44 = arith.constant 0 : index
      %c0_45 = arith.constant 0 : index
      %42 = vector.load %arg8[%c0_44, %c0_45] : memref<16x128xf32, #tpu.memory_space<vmem>>, vector<16x128xf32>
      tpu.vector_store %arg8[%c0_44, %c0_45], %41 {strides = array<i32>} : memref<16x128xf32, #tpu.memory_space<vmem>>, vector<16x128xf32>,
      %c4_i32_46 = arith.constant 4 : i32
      %43 = arith.cmpi slt, %arg1, %c4_i32_46 : i32
      %44 = arith.extui %43 : i1 to i32
      %c0_i32_47 = arith.constant 0 : i32
      %45 = arith.cmpi ne, %44, %c0_i32_47 : i32
      scf.if %45 {
        %46 = vector.shape_cast %41 : vector<16x128xf32> to vector<1x16x128xf32>
        %47 = arith.truncf %46 : vector<1x16x128xf32> to vector<1x16x128xbf16>
        %c0_48 = arith.constant 0 : index
        %c8_49 = arith.constant 8 : index
        %c0_50 = arith.constant 0 : index
        %48 = vector.load %arg7[%c0_48, %c8_49, %c0_50] : memref<1x25x128xbf16, #tpu.memory_space<vmem>>, vector<1x16x128xbf16>
        tpu.vector_store %arg7[%c0_48, %c8_49, %c0_50], %47 {strides = array<i32>} : memref<1x25x128xbf16, #tpu.memory_space<vmem>>, vector<1x16x128xbf16>,
      } else {
      }
    } else {
    }
    %c0_i32_1 = arith.constant 0 : i32
    %3 = arith.cmpi sgt, %arg1, %c0_i32_1 : i32
    %4 = arith.extui %3 : i1 to i32
    %c0_i32_2 = arith.constant 0 : i32
    %5 = arith.cmpi ne, %4, %c0_i32_2 : i32
    scf.if %5 {
      %c0 = arith.constant 0 : index
      %c0_4 = arith.constant 0 : index
      %9 = vector.load %arg8[%c0, %c0_4] : memref<16x128xf32, #tpu.memory_space<vmem>>, vector<16x128xf32>
      %c0_5 = arith.constant 0 : index
      %c7 = arith.constant 7 : index
      %c0_6 = arith.constant 0 : index
      %10 = vector.load %arg7[%c0_5, %c7, %c0_6] : memref<1x25x128xbf16, #tpu.memory_space<vmem>>, vector<1x16x128xbf16>
      %11 = vector.shape_cast %10 : vector<1x16x128xbf16> to vector<16x128xbf16>
      %c0_7 = arith.constant 0 : index
      %c0_8 = arith.constant 0 : index
      %c0_9 = arith.constant 0 : index
      %c0_10 = arith.constant 0 : index
      %c0_11 = arith.constant 0 : index
      %12 = vector.load %arg3[%c0_7, %c0_8, %c0_9, %c0_10, %c0_11] : memref<1x2x3x128x128xbf16, #tpu.memory_space<vmem>>, vector<1x1x1x128x128xbf16>
      %13 = vector.shape_cast %12 : vector<1x1x1x128x128xbf16> to vector<128x128xbf16>
      %cst = arith.constant dense<0.000000e+00> : vector<16x128xf32>
      %14 = tpu.matmul %11, %13, %cst {dimension_numbers = #tpu.dot_dimension_numbers<[1], [0], [0], [1], [0, 0, 1, 1], [], []>} : vector<16x128xbf16>, vector<128x128xbf16>, vector<16x128xf32> -> vector<16x128xf32>
      %c0_12 = arith.constant 0 : index
      %c8 = arith.constant 8 : index
      %c0_13 = arith.constant 0 : index
      %15 = vector.load %arg7[%c0_12, %c8, %c0_13] : memref<1x25x128xbf16, #tpu.memory_space<vmem>>, vector<1x16x128xbf16>
      %16 = vector.shape_cast %15 : vector<1x16x128xbf16> to vector<16x128xbf16>
      %c0_14 = arith.constant 0 : index
      %c0_15 = arith.constant 0 : index
      %c1 = arith.constant 1 : index
      %c0_16 = arith.constant 0 : index
      %c0_17 = arith.constant 0 : index
      %17 = vector.load %arg3[%c0_14, %c0_15, %c1, %c0_16, %c0_17] : memref<1x2x3x128x128xbf16, #tpu.memory_space<vmem>>, vector<1x1x1x128x128xbf16>
      %18 = vector.shape_cast %17 : vector<1x1x1x128x128xbf16> to vector<128x128xbf16>
      %cst_18 = arith.constant dense<0.000000e+00> : vector<16x128xf32>
      %19 = tpu.matmul %16, %18, %cst_18 {dimension_numbers = #tpu.dot_dimension_numbers<[1], [0], [0], [1], [0, 0, 1, 1], [], []>} : vector<16x128xbf16>, vector<128x128xbf16>, vector<16x128xf32> -> vector<16x128xf32>
      %20 = arith.addf %14, %19 : vector<16x128xf32>
      %c0_19 = arith.constant 0 : index
      %c9 = arith.constant 9 : index
      %c0_20 = arith.constant 0 : index
      %21 = vector.load %arg7[%c0_19, %c9, %c0_20] : memref<1x25x128xbf16, #tpu.memory_space<vmem>>, vector<1x16x128xbf16>
      %22 = vector.shape_cast %21 : vector<1x16x128xbf16> to vector<16x128xbf16>
      %c0_21 = arith.constant 0 : index
      %c0_22 = arith.constant 0 : index
      %c2 = arith.constant 2 : index
      %c0_23 = arith.constant 0 : index
      %c0_24 = arith.constant 0 : index
      %23 = vector.load %arg3[%c0_21, %c0_22, %c2, %c0_23, %c0_24] : memref<1x2x3x128x128xbf16, #tpu.memory_space<vmem>>, vector<1x1x1x128x128xbf16>
      %24 = vector.shape_cast %23 : vector<1x1x1x128x128xbf16> to vector<128x128xbf16>
      %cst_25 = arith.constant dense<0.000000e+00> : vector<16x128xf32>
      %25 = tpu.matmul %22, %24, %cst_25 {dimension_numbers = #tpu.dot_dimension_numbers<[1], [0], [0], [1], [0, 0, 1, 1], [], []>} : vector<16x128xbf16>, vector<128x128xbf16>, vector<16x128xf32> -> vector<16x128xf32>
      %26 = arith.addf %20, %25 : vector<16x128xf32>
      %c0_26 = arith.constant 0 : index
      %c0_27 = arith.constant 0 : index
      %c0_28 = arith.constant 0 : index
      %c0_29 = arith.constant 0 : index
      %27 = vector.load %arg4[%c0_26, %c0_27, %c0_28, %c0_29] : memref<1x2x1x128xf32, #tpu.memory_space<vmem>>, vector<1x1x1x128xf32>
      %28 = vector.shape_cast %27 : vector<1x1x1x128xf32> to vector<1x128xf32>
      %29 = vector.broadcast %28 : vector<1x128xf32> to vector<16x128xf32>
      %30 = arith.mulf %26, %29 : vector<16x128xf32>
      %c0_30 = arith.constant 0 : index
      %c0_31 = arith.constant 0 : index
      %c0_32 = arith.constant 0 : index
      %c0_33 = arith.constant 0 : index
      %31 = vector.load %arg5[%c0_30, %c0_31, %c0_32, %c0_33] : memref<1x2x1x128xf32, #tpu.memory_space<vmem>>, vector<1x1x1x128xf32>
      %32 = vector.shape_cast %31 : vector<1x1x1x128xf32> to vector<1x128xf32>
      %33 = vector.broadcast %32 : vector<1x128xf32> to vector<16x128xf32>
      %34 = arith.addf %30, %33 : vector<16x128xf32>
      %cst_34 = arith.constant 0.000000e+00 : f32
      %35 = vector.broadcast %cst_34 : f32 to vector<16x128xf32>
      %36 = arith.maximumf %34, %35 : vector<16x128xf32>
      %37 = vector.shape_cast %36 : vector<16x128xf32> to vector<1x16x128xf32>
      %38 = arith.truncf %37 : vector<1x16x128xf32> to vector<1x16x128xbf16>
      %c0_35 = arith.constant 0 : index
      %c8_36 = arith.constant 8 : index
      %c0_37 = arith.constant 0 : index
      %39 = vector.load %arg7[%c0_35, %c8_36, %c0_37] : memref<1x25x128xbf16, #tpu.memory_space<vmem>>, vector<1x16x128xbf16>
      tpu.vector_store %arg7[%c0_35, %c8_36, %c0_37], %38 {strides = array<i32>} : memref<1x25x128xbf16, #tpu.memory_space<vmem>>, vector<1x16x128xbf16>,
      %c0_38 = arith.constant 0 : index
      %c7_39 = arith.constant 7 : index
      %c0_40 = arith.constant 0 : index
      %40 = vector.load %arg7[%c0_38, %c7_39, %c0_40] : memref<1x25x128xbf16, #tpu.memory_space<vmem>>, vector<1x16x128xbf16>
      %41 = vector.shape_cast %40 : vector<1x16x128xbf16> to vector<16x128xbf16>
      %c0_41 = arith.constant 0 : index
      %c1_42 = arith.constant 1 : index
      %c0_43 = arith.constant 0 : index
      %c0_44 = arith.constant 0 : index
      %c0_45 = arith.constant 0 : index
      %42 = vector.load %arg3[%c0_41, %c1_42, %c0_43, %c0_44, %c0_45] : memref<1x2x3x128x128xbf16, #tpu.memory_space<vmem>>, vector<1x1x1x128x128xbf16>
      %43 = vector.shape_cast %42 : vector<1x1x1x128x128xbf16> to vector<128x128xbf16>
      %cst_46 = arith.constant dense<0.000000e+00> : vector<16x128xf32>
      %44 = tpu.matmul %41, %43, %cst_46 {dimension_numbers = #tpu.dot_dimension_numbers<[1], [0], [0], [1], [0, 0, 1, 1], [], []>} : vector<16x128xbf16>, vector<128x128xbf16>, vector<16x128xf32> -> vector<16x128xf32>
      %c0_47 = arith.constant 0 : index
      %c8_48 = arith.constant 8 : index
      %c0_49 = arith.constant 0 : index
      %45 = vector.load %arg7[%c0_47, %c8_48, %c0_49] : memref<1x25x128xbf16, #tpu.memory_space<vmem>>, vector<1x16x128xbf16>
      %46 = vector.shape_cast %45 : vector<1x16x128xbf16> to vector<16x128xbf16>
      %c0_50 = arith.constant 0 : index
      %c1_51 = arith.constant 1 : index
      %c1_52 = arith.constant 1 : index
      %c0_53 = arith.constant 0 : index
      %c0_54 = arith.constant 0 : index
      %47 = vector.load %arg3[%c0_50, %c1_51, %c1_52, %c0_53, %c0_54] : memref<1x2x3x128x128xbf16, #tpu.memory_space<vmem>>, vector<1x1x1x128x128xbf16>
      %48 = vector.shape_cast %47 : vector<1x1x1x128x128xbf16> to vector<128x128xbf16>
      %cst_55 = arith.constant dense<0.000000e+00> : vector<16x128xf32>
      %49 = tpu.matmul %46, %48, %cst_55 {dimension_numbers = #tpu.dot_dimension_numbers<[1], [0], [0], [1], [0, 0, 1, 1], [], []>} : vector<16x128xbf16>, vector<128x128xbf16>, vector<16x128xf32> -> vector<16x128xf32>
      %50 = arith.addf %44, %49 : vector<16x128xf32>
      %c0_56 = arith.constant 0 : index
      %c9_57 = arith.constant 9 : index
      %c0_58 = arith.constant 0 : index
      %51 = vector.load %arg7[%c0_56, %c9_57, %c0_58] : memref<1x25x128xbf16, #tpu.memory_space<vmem>>, vector<1x16x128xbf16>
      %52 = vector.shape_cast %51 : vector<1x16x128xbf16> to vector<16x128xbf16>
      %c0_59 = arith.constant 0 : index
      %c1_60 = arith.constant 1 : index
      %c2_61 = arith.constant 2 : index
      %c0_62 = arith.constant 0 : index
      %c0_63 = arith.constant 0 : index
      %53 = vector.load %arg3[%c0_59, %c1_60, %c2_61, %c0_62, %c0_63] : memref<1x2x3x128x128xbf16, #tpu.memory_space<vmem>>, vector<1x1x1x128x128xbf16>
      %54 = vector.shape_cast %53 : vector<1x1x1x128x128xbf16> to vector<128x128xbf16>
      %cst_64 = arith.constant dense<0.000000e+00> : vector<16x128xf32>
      %55 = tpu.matmul %52, %54, %cst_64 {dimension_numbers = #tpu.dot_dimension_numbers<[1], [0], [0], [1], [0, 0, 1, 1], [], []>} : vector<16x128xbf16>, vector<128x128xbf16>, vector<16x128xf32> -> vector<16x128xf32>
      %56 = arith.addf %50, %55 : vector<16x128xf32>
      %c0_65 = arith.constant 0 : index
      %c1_66 = arith.constant 1 : index
      %c0_67 = arith.constant 0 : index
      %c0_68 = arith.constant 0 : index
      %57 = vector.load %arg4[%c0_65, %c1_66, %c0_67, %c0_68] : memref<1x2x1x128xf32, #tpu.memory_space<vmem>>, vector<1x1x1x128xf32>
      %58 = vector.shape_cast %57 : vector<1x1x1x128xf32> to vector<1x128xf32>
      %59 = vector.broadcast %58 : vector<1x128xf32> to vector<16x128xf32>
      %60 = arith.mulf %56, %59 : vector<16x128xf32>
      %c0_69 = arith.constant 0 : index
      %c1_70 = arith.constant 1 : index
      %c0_71 = arith.constant 0 : index
      %c0_72 = arith.constant 0 : index
      %61 = vector.load %arg5[%c0_69, %c1_70, %c0_71, %c0_72] : memref<1x2x1x128xf32, #tpu.memory_space<vmem>>, vector<1x1x1x128xf32>
      %62 = vector.shape_cast %61 : vector<1x1x1x128xf32> to vector<1x128xf32>
      %63 = vector.broadcast %62 : vector<1x128xf32> to vector<16x128xf32>
      %64 = arith.addf %60, %63 : vector<16x128xf32>
      %65 = arith.addf %64, %9 : vector<16x128xf32>
      %cst_73 = arith.constant 0.000000e+00 : f32
      %66 = vector.broadcast %cst_73 : f32 to vector<16x128xf32>
      %67 = arith.maximumf %65, %66 : vector<16x128xf32>
      %c0_74 = arith.constant 0 : index
      %c0_75 = arith.constant 0 : index
      %68 = vector.load %arg8[%c0_74, %c0_75] : memref<16x128xf32, #tpu.memory_space<vmem>>, vector<16x128xf32>
      tpu.vector_store %arg8[%c0_74, %c0_75], %67 {strides = array<i32>} : memref<16x128xf32, #tpu.memory_space<vmem>>, vector<16x128xf32>,
      %c4_i32_76 = arith.constant 4 : i32
      %69 = arith.cmpi slt, %arg1, %c4_i32_76 : i32
      %70 = arith.extui %69 : i1 to i32
      %c0_i32_77 = arith.constant 0 : i32
      %71 = arith.cmpi ne, %70, %c0_i32_77 : i32
      scf.if %71 {
        %72 = vector.shape_cast %67 : vector<16x128xf32> to vector<1x16x128xf32>
        %73 = arith.truncf %72 : vector<1x16x128xf32> to vector<1x16x128xbf16>
        %c0_78 = arith.constant 0 : index
        %c8_79 = arith.constant 8 : index
        %c0_80 = arith.constant 0 : index
        %74 = vector.load %arg7[%c0_78, %c8_79, %c0_80] : memref<1x25x128xbf16, #tpu.memory_space<vmem>>, vector<1x16x128xbf16>
        tpu.vector_store %arg7[%c0_78, %c8_79, %c0_80], %73 {strides = array<i32>} : memref<1x25x128xbf16, #tpu.memory_space<vmem>>, vector<1x16x128xbf16>,
      } else {
      }
    } else {
    }
    %c4_i32 = arith.constant 4 : i32
    %6 = arith.cmpi eq, %arg1, %c4_i32 : i32
    %7 = arith.extui %6 : i1 to i32
    %c0_i32_3 = arith.constant 0 : i32
    %8 = arith.cmpi ne, %7, %c0_i32_3 : i32
    scf.if %8 {
      %c0 = arith.constant 0 : index
      %c0_4 = arith.constant 0 : index
      %9 = vector.load %arg8[%c0, %c0_4] : memref<16x128xf32, #tpu.memory_space<vmem>>, vector<16x128xf32>
      %10 = vector.shape_cast %9 : vector<16x128xf32> to vector<1x16x128xf32>
      %11 = arith.truncf %10 : vector<1x16x128xf32> to vector<1x16x128xbf16>
      %c0_5 = arith.constant 0 : index
      %c0_6 = arith.constant 0 : index
      %c0_7 = arith.constant 0 : index
      %12 = vector.load %arg6[%c0_5, %c0_6, %c0_7] : memref<1x16x128xbf16, #tpu.memory_space<vmem>>, vector<1x16x128xbf16>
      tpu.vector_store %arg6[%c0_5, %c0_6, %c0_7], %11 {strides = array<i32>} : memref<1x16x128xbf16, #tpu.memory_space<vmem>>, vector<1x16x128xbf16>,
    } else {
    }
    return
  }
  func.func @transform_0(%arg0: i32, %arg1: i32) -> (i32, i32, i32) {
    %c0_i32 = arith.constant 0 : i32
    %c0_i32_0 = arith.constant 0 : i32
    %c0_i32_1 = arith.constant 0 : i32
    return %arg0, %c0_i32, %c0_i32_0 : i32, i32, i32
  }
  func.func @transform_1(%arg0: i32, %arg1: i32) -> (i32, i32, i32, i32, i32) {
    %c0_i32 = arith.constant 0 : i32
    %c0_i32_0 = arith.constant 0 : i32
    %c0_i32_1 = arith.constant 0 : i32
    %c0_i32_2 = arith.constant 0 : i32
    %c0_i32_3 = arith.constant 0 : i32
    return %arg1, %c0_i32, %c0_i32_0, %c0_i32_1, %c0_i32_2 : i32, i32, i32, i32, i32
  }
  func.func @transform_2(%arg0: i32, %arg1: i32) -> (i32, i32, i32, i32) {
    %c0_i32 = arith.constant 0 : i32
    %c0_i32_0 = arith.constant 0 : i32
    %c0_i32_1 = arith.constant 0 : i32
    %c0_i32_2 = arith.constant 0 : i32
    return %arg1, %c0_i32, %c0_i32_0, %c0_i32_1 : i32, i32, i32, i32
  }
  func.func @transform_3(%arg0: i32, %arg1: i32) -> (i32, i32, i32, i32) {
    %c0_i32 = arith.constant 0 : i32
    %c0_i32_0 = arith.constant 0 : i32
    %c0_i32_1 = arith.constant 0 : i32
    %c0_i32_2 = arith.constant 0 : i32
    return %arg1, %c0_i32, %c0_i32_0, %c0_i32_1 : i32, i32, i32, i32
  }
  func.func @transform_4(%arg0: i32, %arg1: i32) -> (i32, i32, i32) {
    %c0_i32 = arith.constant 0 : i32
    %c0_i32_0 = arith.constant 0 : i32
    %c0_i32_1 = arith.constant 0 : i32
    return %arg0, %c0_i32, %c0_i32_0 : i32, i32, i32
  }
}

</mosaic_0001>

<llo_original>
// kernel: tpu_custom_call.1
$region0: #{tpu_custom_call.1}
  #allocation0 [shape = 'u32[]', space=smem, size = 0x4, offset = 0x4, fixed_abs, tag = 'smem constant byte address 0x4 - core index']
  #allocation1 [shape = 'u32[144,128]{1,0:T(1,128)}', space=vmem, size = 0x12000, scoped, tag = 'internal scratch']
  #allocation2 [shape = 'bf16[1,25,128]{2,1,0:T(8,128)(2,1)}', space=vmem, size = 0x2000, scoped, tag = 'scratch operand']
  #allocation3 [shape = 'f32[16,128]{1,0:T(8,128)}', space=vmem, size = 0x2000, scoped, tag = 'scratch operand']
  %s0 = inlined_call_operand.vmem [shape: bf16[2,16,8], index: 0, kind: input, shape index: {}]
  %s1 = inlined_call_operand.hbm [shape: bf16[5,2,3,128,128], index: 1, kind: input, shape index: {}]
  %s2 = inlined_call_operand.vmem [shape: f32[5,2,1,128], index: 2, kind: input, shape index: {}]
  %s3 = inlined_call_operand.vmem [shape: f32[5,2,1,128], index: 3, kind: input, shape index: {}]
  %s4 = inlined_call_operand.hbm [shape: bf16[2,16,128], index: 4, kind: output, shape index: {}]
  %s5 = sld [smem:[#allocation0]]
  $region73: #{tpu_custom_call.1} parent=0
    _
  %s7 = ssub.s32 1, %s5
  %s8 = scalar_select 0, %s7, %s5
  $region1: #{tpu_custom_call.1} parent=0
    #allocation4 [shape = 'u8[393216]{0}', space=vmem, size = 0x60000, scoped, tag = 'input window, operand 1']
    #allocation5 [shape = 's32[2]{0}', space=sflag, size = 0x8, scoped, tag = 'scoped memory for tpu_custom_call.1']
    #allocation6 [shape = 's32[2]{0}', space=sflag, size = 0x8, scoped, tag = 'scoped memory for tpu_custom_call.1']
    #allocation7 [shape = 'u8[8192]{0}', space=vmem, size = 0x2000, scoped, tag = 'output window, operand 0']
    %9 = vsyncpa [#allocation5], 0
    %s10 = scalar_lea.sflag [#allocation5], 1
    %11 = vsyncpa %s10, 0
    %12 = vsyncpa [#allocation6], 0
    %s13 = scalar_lea.sflag [#allocation6], 1
    %14 = vsyncpa %s13, 0
    loop: start=0, step=1, limit=12
    $region2: #{tpu_custom_call.1} parent=1 // loop_pre_header
      _
    $region3: #{tpu_custom_call.1} parent=1 // loop_header
      %s16 = sphi 0, %s20
      %p17 = scmp.ge.s32.totalorder %s16, 12
      %s23 = sphi 0, %s35
      %s24 = sphi 0, %s31
      %s25 = sphi 0, %s23
      %s26 = sphi 0, %s24
      %s27 = sphi 0, %s25
      %s28 = sphi 0, %s26
      %s38 = sphi 0, %s40
      %s41 = sphi 0, %s38
      %s42 = sphi 0, %s41
      %s58 = sphi 0, %s42
      %s64 = sphi 0, %s66
      %s67 = sphi 0, %s64
      %s68 = sphi 0, %s67
      %s84 = sphi 0, %s68
      %s90 = sphi 0, %s92
      %s93 = sphi 0, %s90
      %s94 = sphi 0, %s93
      %s110 = sphi 0, %s94
      %s116 = sphi 0, %s118
      %s119 = sphi 0, %s116
      %s120 = sphi 0, %s119
      %s136 = sphi 0, %s120
      %s142 = sphi 0, %s144
      %s145 = sphi 0, %s142
      %s146 = sphi 0, %s145
      %s162 = sphi 0, %s146
    $region4: #{tpu_custom_call.1} parent=1 // loop_header_branch
      %19 = sbr.rel (%p17) target = $region8
    $region5: #{tpu_custom_call.1} parent=1 // loop_body
      %s21 = ssub.s32 %s16, 1
      %s22 = ssub.s32 %s16, 2
      %s29 = sadd.s32 1, %s24
      %p30 = scmp.ge.s32.totalorder %s29, 5
      %s31 = scalar_select %p30, 0, %s29
      %s32 = sadd.s32 1, %s23
      %s33 = scalar_select %p30, %s32, %s23
      %p34 = scmp.ge.s32.totalorder %s33, 2
      %s35 = scalar_select %p34, 0, %s33
      %s36 = ssub.s32 %s23, %s35
      %p37 = scmp.eq.s32.totalorder %s36, 0
      %s39 = sadd.s32 %s38, 1
      %s40 = scalar_select %p37, %s38, %s39
      %p43 = pneg %p37
      %p44 = scmp.eq.s32.totalorder %s16, 9
      %p45 = por %p43, %p44
      %p46 = scmp.ne.s32.totalorder %s38, %s41
      %p47 = scmp.eq.s32.totalorder %s16, 0
      %p48 = por %p46, %p47
      %p49 = scmp.ne.s32.totalorder %s38, %s41
      %p50 = scmp.eq.s32.totalorder %s21, 9
      %p51 = por %p49, %p50
      %p52 = scmp.ne.s32.totalorder %s41, %s42
      %p53 = scmp.eq.s32.totalorder %s21, 0
      %p54 = por %p52, %p53
      %p55 = scmp.ne.s32.totalorder %s41, %s42
      %p56 = scmp.eq.s32.totalorder %s22, 9
      %p57 = por %p55, %p56
      %p59 = scmp.ne.s32.totalorder %s42, %s58
      %p60 = scmp.eq.s32.totalorder %s22, 0
      %p61 = por %p59, %p60
      %s62 = ssub.s32 %s24, %s31
      %p63 = scmp.eq.s32.totalorder %s62, 0
      %s65 = sadd.s32 %s64, 1
      %s66 = scalar_select %p63, %s64, %s65
      %p69 = pneg %p63
      %p70 = scmp.eq.s32.totalorder %s16, 9
      %p71 = por %p69, %p70
      %p72 = scmp.ne.s32.totalorder %s64, %s67
      %p73 = scmp.eq.s32.totalorder %s16, 0
      %p74 = por %p72, %p73
      %p75 = scmp.ne.s32.totalorder %s64, %s67
      %p76 = scmp.eq.s32.totalorder %s21, 9
      %p77 = por %p75, %p76
      %p78 = scmp.ne.s32.totalorder %s67, %s68
      %p79 = scmp.eq.s32.totalorder %s21, 0
      %p80 = por %p78, %p79
      %p81 = scmp.ne.s32.totalorder %s67, %s68
      %p82 = scmp.eq.s32.totalorder %s22, 9
      %p83 = por %p81, %p82
      %p85 = scmp.ne.s32.totalorder %s68, %s84
      %p86 = scmp.eq.s32.totalorder %s22, 0
      %p87 = por %p85, %p86
      %s88 = ssub.s32 %s24, %s31
      %p89 = scmp.eq.s32.totalorder %s88, 0
      %s91 = sadd.s32 %s90, 1
      %s92 = scalar_select %p89, %s90, %s91
      %p95 = pneg %p89
      %p96 = scmp.eq.s32.totalorder %s16, 9
      %p97 = por %p95, %p96
      %p98 = scmp.ne.s32.totalorder %s90, %s93
      %p99 = scmp.eq.s32.totalorder %s16, 0
      %p100 = por %p98, %p99
      %p101 = scmp.ne.s32.totalorder %s90, %s93
      %p102 = scmp.eq.s32.totalorder %s21, 9
      %p103 = por %p101, %p102
      %p104 = scmp.ne.s32.totalorder %s93, %s94
      %p105 = scmp.eq.s32.totalorder %s21, 0
      %p106 = por %p104, %p105
      %p107 = scmp.ne.s32.totalorder %s93, %s94
      %p108 = scmp.eq.s32.totalorder %s22, 9
      %p109 = por %p107, %p108
      %p111 = scmp.ne.s32.totalorder %s94, %s110
      %p112 = scmp.eq.s32.totalorder %s22, 0
      %p113 = por %p111, %p112
      %s114 = ssub.s32 %s24, %s31
      %p115 = scmp.eq.s32.totalorder %s114, 0
      %s117 = sadd.s32 %s116, 1
      %s118 = scalar_select %p115, %s116, %s117
      %p121 = pneg %p115
      %p122 = scmp.eq.s32.totalorder %s16, 9
      %p123 = por %p121, %p122
      %p124 = scmp.ne.s32.totalorder %s116, %s119
      %p125 = scmp.eq.s32.totalorder %s16, 0
      %p126 = por %p124, %p125
      %p127 = scmp.ne.s32.totalorder %s116, %s119
      %p128 = scmp.eq.s32.totalorder %s21, 9
      %p129 = por %p127, %p128
      %p130 = scmp.ne.s32.totalorder %s119, %s120
      %p131 = scmp.eq.s32.totalorder %s21, 0
      %p132 = por %p130, %p131
      %p133 = scmp.ne.s32.totalorder %s119, %s120
      %p134 = scmp.eq.s32.totalorder %s22, 9
      %p135 = por %p133, %p134
      %p137 = scmp.ne.s32.totalorder %s120, %s136
      %p138 = scmp.eq.s32.totalorder %s22, 0
      %p139 = por %p137, %p138
      %s140 = ssub.s32 %s23, %s35
      %p141 = scmp.eq.s32.totalorder %s140, 0
      %s143 = sadd.s32 %s142, 1
      %s144 = scalar_select %p141, %s142, %s143
      %p147 = pneg %p141
      %p148 = scmp.eq.s32.totalorder %s16, 9
      %p149 = por %p147, %p148
      %p150 = scmp.ne.s32.totalorder %s142, %s145
      %p151 = scmp.eq.s32.totalorder %s16, 0
      %p152 = por %p150, %p151
      %p153 = scmp.ne.s32.totalorder %s142, %s145
      %p154 = scmp.eq.s32.totalorder %s21, 9
      %p155 = por %p153, %p154
      %p156 = scmp.ne.s32.totalorder %s145, %s146
      %p157 = scmp.eq.s32.totalorder %s21, 0
      %p158 = por %p156, %p157
      %p159 = scmp.ne.s32.totalorder %s145, %s146
      %p160 = scmp.eq.s32.totalorder %s22, 9
      %p161 = por %p159, %p160
      %p163 = scmp.ne.s32.totalorder %s146, %s162
      %p164 = scmp.eq.s32.totalorder %s22, 0
      %p165 = por %p163, %p164
      %p166 = scmp.le.s32.totalorder 1, %s16
      %p167 = scmp.lt.s32.totalorder %s16, 11
      %p168 = pnand %p166, %p167
      %p169 = pneg %p168
      // Predicated region
      $region9: #{tpu_custom_call.1} parent=5 // pred_check
        _
      $region10: #{tpu_custom_call.1} parent=5 // pred_check_branch
        %171 = sbr.rel (%p168) target = $region12
      $region11: #{tpu_custom_call.1} parent=5 // pred_region
        %s172 = ssub.s32 %s16, 1
      $region12: #{tpu_custom_call.1} parent=5 // pred_fallthru
        _
      %p173 = scmp.lt.s32.totalorder %s16, 10
      // Predicated region
      $region13: #{tpu_custom_call.1} parent=5 // pred_check
        %p174 = pneg %p173
      $region14: #{tpu_custom_call.1} parent=5 // pred_check_branch
        %176 = sbr.rel (%p174) target = $region16
      $region15: #{tpu_custom_call.1} parent=5 // pred_region
        // Predicated region
        $region17: #{tpu_custom_call.1} parent=15 // pred_check
          %p177 = pneg %p48
        $region18: #{tpu_custom_call.1} parent=15 // pred_check_branch
          %179 = sbr.rel (%p177) target = $region20
        $region19: #{tpu_custom_call.1} parent=15 // pred_region
          %p180 = scmp.lt.s32.totalorder %s23, 1
          %s181 = scalar_select %p180, %s23, 1
          %s182 = smul.addr %s181, 2
          %s183 = smul.addr %s182, 4
          %s184 = scalar_lea.vmem %s0, %s183
        $region20: #{tpu_custom_call.1} parent=15 // pred_fallthru
          _
        // Predicated region
        $region21: #{tpu_custom_call.1} parent=15 // pred_check
          %p185 = pneg %p74
        $region22: #{tpu_custom_call.1} parent=15 // pred_check_branch
          %187 = sbr.rel (%p185) target = $region24
        $region23: #{tpu_custom_call.1} parent=15 // pred_region
          %s188 = sand.u32 %s64, 1
          %s189 = scalar_lea.sflag [#allocation5], %s188
          %s190 = sand.u32 %s64, 1
          %s191 = smul.addr %s190, 384
          %s192 = scalar_lea.vmem [#allocation4], %s191
          %s194 = ssub.s32 6144, 6144
          %195 = vsyncadd %s189, %s194
          %s196 = smul.addr %s24, 96
          %s197 = smul.addr %s196, 64
          %s198 = scalar_lea.hbm %s1, %s197
          %s199 = sshll.u32 %s192, 4
          %s200 = int_to_ptr.vmem [resolvable:$true] %s199
          %205 = dma.hbm_to_vmem [thread:$0]  %s198, 6144, %s200, %s189, 64, 64, 4
        $region24: #{tpu_custom_call.1} parent=15 // pred_fallthru
          _
        // Predicated region
        $region25: #{tpu_custom_call.1} parent=15 // pred_check
          %p206 = pneg %p100
        $region26: #{tpu_custom_call.1} parent=15 // pred_check_branch
          %208 = sbr.rel (%p206) target = $region28
        $region27: #{tpu_custom_call.1} parent=15 // pred_region
          %p209 = scmp.lt.s32.totalorder %s24, 4
          %s210 = scalar_select %p209, %s24, 4
          %s211 = smul.addr %s210, 2
          %s212 = scalar_lea.vmem %s2, %s211
        $region28: #{tpu_custom_call.1} parent=15 // pred_fallthru
          _
        // Predicated region
        $region29: #{tpu_custom_call.1} parent=15 // pred_check
          %p213 = pneg %p126
        $region30: #{tpu_custom_call.1} parent=15 // pred_check_branch
          %215 = sbr.rel (%p213) target = $region32
        $region31: #{tpu_custom_call.1} parent=15 // pred_region
          %p216 = scmp.lt.s32.totalorder %s24, 4
          %s217 = scalar_select %p216, %s24, 4
          %s218 = smul.addr %s217, 2
          %s219 = scalar_lea.vmem %s3, %s218
        $region32: #{tpu_custom_call.1} parent=15 // pred_fallthru
          _
      $region16: #{tpu_custom_call.1} parent=5 // pred_fallthru
        _
      %p220 = scmp.le.s32.totalorder 1, %s16
      %p221 = scmp.lt.s32.totalorder %s16, 11
      %p222 = pnand %p220, %p221
      %p223 = pneg %p222
      // Predicated region
      $region33: #{tpu_custom_call.1} parent=5 // pred_check
        _
      $region34: #{tpu_custom_call.1} parent=5 // pred_check_branch
        %225 = sbr.rel (%p222) target = $region36
      $region35: #{tpu_custom_call.1} parent=5 // pred_region
        %s226 = ssub.s32 %s16, 1
        %s227 = sand.u32 %s67, 1
        %s228 = scalar_lea.sflag [#allocation5], %s227
        %s229 = sand.u32 %s67, 1
        %s230 = smul.addr %s229, 384
        %s231 = scalar_lea.vmem [#allocation4], %s230
        // Predicated region
        $region37: #{tpu_custom_call.1} parent=35 // pred_check
          %p232 = pneg %p80
        $region38: #{tpu_custom_call.1} parent=35 // pred_check_branch
          %234 = sbr.rel (%p232) target = $region40
        $region39: #{tpu_custom_call.1} parent=35 // pred_region
          %235 = dma.done %s228, 6144
        $region40: #{tpu_custom_call.1} parent=35 // pred_fallthru
          _
        %p236 = scmp.lt.s32.totalorder %s25, 1
        %s237 = scalar_select %p236, %s25, 1
        %s238 = smul.addr %s237, 2
        %s239 = smul.addr %s238, 4
        %s240 = scalar_lea.vmem %s0, %s239
        %p241 = pneg %p54
        %p242 = pneg %p51
        %s243 = sand.u32 %s67, 1
        %s244 = scalar_lea.sflag [#allocation5], %s243
        %s245 = sand.u32 %s67, 1
        %s246 = smul.addr %s245, 384
        %s247 = scalar_lea.vmem [#allocation4], %s246
        %p248 = pneg %p80
        %p249 = pneg %p77
        %p250 = scmp.lt.s32.totalorder %s26, 4
        %s251 = scalar_select %p250, %s26, 4
        %s252 = smul.addr %s251, 2
        %s253 = scalar_lea.vmem %s2, %s252
        %p254 = pneg %p106
        %p255 = pneg %p103
        %p256 = scmp.lt.s32.totalorder %s26, 4
        %s257 = scalar_select %p256, %s26, 4
        %s258 = smul.addr %s257, 2
        %s259 = scalar_lea.vmem %s3, %s258
        %p260 = pneg %p132
        %p261 = pneg %p129
        %p262 = pneg %p158
        %p263 = pneg %p155
        %s264 = sand.u32 %s145, 1
        %s265 = scalar_lea.sflag [#allocation6], %s264
        %s266 = sand.u32 %s145, 1
        %s267 = smul.addr %s266, 8
        %s268 = scalar_lea.vmem [#allocation7], %s267
        %p269 = scmp.lt.s32.totalorder %s25, 1
        %s270 = scalar_select %p269, %s25, 1
        %s271 = smul.addr %s270, 2
        %s272 = smul.addr %s271, 4
        %s273 = scalar_lea.vmem %s0, %s272
        %p274 = scmp.lt.s32.totalorder %s26, 4
        %s275 = scalar_select %p274, %s26, 4
        %s276 = smul.addr %s275, 2
        %s277 = scalar_lea.vmem %s2, %s276
        %p278 = scmp.lt.s32.totalorder %s26, 4
        %s279 = scalar_select %p278, %s26, 4
        %s280 = smul.addr %s279, 2
        %s281 = scalar_lea.vmem %s3, %s280
        %p283 = scmp.eq.s32.totalorder %s26, 0
        // Predicated region
        $region41: #{tpu_custom_call.1} parent=35 // pred_check
          %p284 = pneg %p283
        $region42: #{tpu_custom_call.1} parent=35 // pred_check_branch
          %286 = sbr.rel (%p284) target = $region44
        $region43: #{tpu_custom_call.1} parent=35 // pred_region
          %287 = vst [vmem:[#allocation2] sm:$0xf] 0
          %288 = vst [vmem:[#allocation2 + $0x4] sm:$0xf] 0
          %289 = vst [vmem:[#allocation2 + $0x8] sm:$0xf] 0
          %vm290 = vcmask 1040384
          %vm291 = vsmask.f32 256
          %vm292 = vmand %vm290, %vm291
          %v293 = vld [vmem:[#allocation2 + $0xc] sm:$0x1]
          %v294 = vsel %vm292, 0, %v293
          %295 = vst [vmem:[#allocation2 + $0xc] sm:$0x1] %v294
          %v296 = vld [vmem:[%s273] sm:$0xf]
          %v297 = vld [vmem:[%s273 + $0x4] sm:$0xf]
          %v300 = vunpack.c.l.b16 %v296
          %v301 = vunpack.c.l.b16 %v297
          %v302 = vpack.c.b16 %v301, %v300
          %vm303 = vcmask 64512
          %v306 = vsel %vm303, %v302, 0
          %v308 = vunpack.c.l.b16 %v306
          %v309 = vunpack.c.h.b16 %v306
          %v310 = vpack.c.b16 %v308, %v308
          %v311 = vpack.c.b16 %v309, %v309
          %314 = vst [vmem:[#allocation2 + $0x4] sm:$0xf] %v310
          %315 = vst [vmem:[#allocation2 + $0x8] sm:$0xf] %v311
          %v316 = vld [vmem:[#allocation2] sm:$0x8]
          %v317 = vld [vmem:[#allocation2 + $0x4] sm:$0xf]
          %v318 = vld [vmem:[#allocation2 + $0x8] sm:$0xf]
          %v319 = vld [vmem:[%s231] sm:$0xf]
          %v320 = vld [vmem:[%s231 + $0x4] sm:$0xf]
          %v321 = vld [vmem:[%s231 + $0x8] sm:$0xf]
          %v322 = vld [vmem:[%s231 + $0xc] sm:$0xf]
          %v323 = vld [vmem:[%s231 + $0x10] sm:$0xf]
          %v324 = vld [vmem:[%s231 + $0x14] sm:$0xf]
          %v325 = vld [vmem:[%s231 + $0x18] sm:$0xf]
          %v326 = vld [vmem:[%s231 + $0x1c] sm:$0xf]
          %v327 = vld [vmem:[%s231 + $0x20] sm:$0xf]
          %v328 = vld [vmem:[%s231 + $0x24] sm:$0xf]
          %v329 = vld [vmem:[%s231 + $0x28] sm:$0xf]
          %v330 = vld [vmem:[%s231 + $0x2c] sm:$0xf]
          %v331 = vld [vmem:[%s231 + $0x30] sm:$0xf]
          %v332 = vld [vmem:[%s231 + $0x34] sm:$0xf]
          %v333 = vld [vmem:[%s231 + $0x38] sm:$0xf]
          %v334 = vld [vmem:[%s231 + $0x3c] sm:$0xf]
          %s335 = scalar_lea.vmem %s231, 64 [#allocation4]
          %v336 = vld [vmem:[%s335] sm:$0xf]
          %v337 = vld [vmem:[%s335 + $0x4] sm:$0xf]
          %v338 = vld [vmem:[%s335 + $0x8] sm:$0xf]
          %v339 = vld [vmem:[%s335 + $0xc] sm:$0xf]
          %v340 = vld [vmem:[%s335 + $0x10] sm:$0xf]
          %v341 = vld [vmem:[%s335 + $0x14] sm:$0xf]
          %v342 = vld [vmem:[%s335 + $0x18] sm:$0xf]
          %v343 = vld [vmem:[%s335 + $0x1c] sm:$0xf]
          %v344 = vld [vmem:[%s335 + $0x20] sm:$0xf]
          %v345 = vld [vmem:[%s335 + $0x24] sm:$0xf]
          %v346 = vld [vmem:[%s335 + $0x28] sm:$0xf]
          %v347 = vld [vmem:[%s335 + $0x2c] sm:$0xf]
          %v348 = vld [vmem:[%s335 + $0x30] sm:$0xf]
          %v349 = vld [vmem:[%s335 + $0x34] sm:$0xf]
          %v350 = vld [vmem:[%s335 + $0x38] sm:$0xf]
          %v351 = vld [vmem:[%s335 + $0x3c] sm:$0xf]
          %v354 = vunpack.c.l.b16 %v317
          %v355 = vunpack.c.l.b16 %v318
          %v356 = vpack.c.b16 %v355, %v354
          %v374 = vunpack.c.l.b16 %v336
          %v375 = vunpack.c.l.b16 %v337
          %v376 = vunpack.c.l.b16 %v338
          %v377 = vunpack.c.l.b16 %v339
          %v378 = vunpack.c.l.b16 %v340
          %v379 = vunpack.c.l.b16 %v341
          %v380 = vunpack.c.l.b16 %v342
          %v381 = vunpack.c.l.b16 %v343
          %v382 = vunpack.c.l.b16 %v344
          %v383 = vunpack.c.l.b16 %v345
          %v384 = vunpack.c.l.b16 %v346
          %v385 = vunpack.c.l.b16 %v347
          %v386 = vunpack.c.l.b16 %v348
          %v387 = vunpack.c.l.b16 %v349
          %v388 = vunpack.c.l.b16 %v350
          %v389 = vunpack.c.l.b16 %v351
          %v390 = vpack.c.b16 %v375, %v374
          %v391 = vpack.c.b16 %v377, %v376
          %v392 = vpack.c.b16 %v379, %v378
          %v393 = vpack.c.b16 %v381, %v380
          %v394 = vpack.c.b16 %v383, %v382
          %v395 = vpack.c.b16 %v385, %v384
          %v396 = vpack.c.b16 %v387, %v386
          %v397 = vpack.c.b16 %v389, %v388
          %406 = vmatprep.subr.bf16.mxu0 0
          %407 = vmatpush1.bf16.msra.mxu0 %v390
          %408 = vmatprep.subr.bf16.mxu0 0
          %409 = vmatpush1.bf16.msra.mxu0 %v391
          %410 = vmatprep.subr.bf16.mxu0 0
          %411 = vmatpush1.bf16.msra.mxu0 %v392
          %412 = vmatprep.subr.bf16.mxu0 0
          %413 = vmatpush1.bf16.msra.mxu0 %v393
          %414 = vmatprep.subr.bf16.mxu0 0
          %415 = vmatpush1.bf16.msra.mxu0 %v394
          %416 = vmatprep.subr.bf16.mxu0 0
          %417 = vmatpush1.bf16.msra.mxu0 %v395
          %418 = vmatprep.subr.bf16.mxu0 0
          %419 = vmatpush1.bf16.msra.mxu0 %v396
          %420 = vmatprep.subr.bf16.mxu0 0
          %421 = vmatpush1.bf16.msra.mxu0 %v397
          %422 = vmatprep.subr.bf16.mxu0 0
          %423 = vmatpush1.bf16.msra.mxu0 0
          %424 = vmatprep.subr.bf16.mxu0 0
          %425 = vmatpush1.bf16.msra.mxu0 0
          %426 = vmatprep.subr.bf16.mxu0 0
          %427 = vmatpush1.bf16.msra.mxu0 0
          %428 = vmatprep.subr.bf16.mxu0 0
          %429 = vmatpush1.bf16.msra.mxu0 0
          %430 = vmatprep.subr.bf16.mxu0 0
          %431 = vmatpush1.bf16.msra.mxu0 0
          %432 = vmatprep.subr.bf16.mxu0 0
          %433 = vmatpush1.bf16.msra.mxu0 0
          %434 = vmatprep.subr.bf16.mxu0 0
          %435 = vmatpush1.bf16.msra.mxu0 0
          %436 = vmatprep.subr.bf16.mxu0 0
          %437 = vmatpush1.bf16.msra.mxu0 0
          %438 = vmatprep.mubr.bf16.mxu0 0
          %439 = vmatmul.mubr.bf16.gmra.mrb[0].mxu0 %v356
          %v440 = vpop.f32.mrb[0].mxu0
          %v441 = vadd.f32 0.0, %v440
          %v442 = vpop.f32.mrb[0].mxu0
          %v443 = vpop.f32.mrb[0].mxu0
          %v444 = vadd.f32 0.0, %v443
          %v445 = vpop.f32.mrb[0].mxu0
          %446 = vdwg.mxu0
          %v448 = vunpack.c.l.b16 %v316
          %v449 = vpack.c.b16 %v354, %v448
          %v450 = vpack.c.b16 %v355, %v355
          %vm451 = vsmask.f32 4352
          %v453 = vshrl.u32 %v449, 16
          %v455 = vrot.slane %v453, 3
          %v456 = vshll.u32 %v449, 16
          %v458 = vrot.slane %v456, 4
          %v459 = vor.u32 %v455, %v458
          %v461 = vshrl.u32 %v450, 16
          %v463 = vrot.slane %v461, 3
          %v464 = vshll.u32 %v450, 16
          %v466 = vrot.slane %v464, 4
          %v467 = vor.u32 %v463, %v466
          %v468 = vsel %vm451, %v459, %v467
          %v486 = vunpack.c.l.b16 %v319
          %v487 = vunpack.c.l.b16 %v320
          %v488 = vunpack.c.l.b16 %v321
          %v489 = vunpack.c.l.b16 %v322
          %v490 = vunpack.c.l.b16 %v323
          %v491 = vunpack.c.l.b16 %v324
          %v492 = vunpack.c.l.b16 %v325
          %v493 = vunpack.c.l.b16 %v326
          %v494 = vunpack.c.l.b16 %v327
          %v495 = vunpack.c.l.b16 %v328
          %v496 = vunpack.c.l.b16 %v329
          %v497 = vunpack.c.l.b16 %v330
          %v498 = vunpack.c.l.b16 %v331
          %v499 = vunpack.c.l.b16 %v332
          %v500 = vunpack.c.l.b16 %v333
          %v501 = vunpack.c.l.b16 %v334
          %v502 = vpack.c.b16 %v487, %v486
          %v503 = vpack.c.b16 %v489, %v488
          %v504 = vpack.c.b16 %v491, %v490
          %v505 = vpack.c.b16 %v493, %v492
          %v506 = vpack.c.b16 %v495, %v494
          %v507 = vpack.c.b16 %v497, %v496
          %v508 = vpack.c.b16 %v499, %v498
          %v509 = vpack.c.b16 %v501, %v500
          %518 = vmatprep.subr.bf16.mxu0 0
          %519 = vmatpush1.bf16.msra.mxu0 %v502
          %520 = vmatprep.subr.bf16.mxu0 0
          %521 = vmatpush1.bf16.msra.mxu0 %v503
          %522 = vmatprep.subr.bf16.mxu0 0
          %523 = vmatpush1.bf16.msra.mxu0 %v504
          %524 = vmatprep.subr.bf16.mxu0 0
          %525 = vmatpush1.bf16.msra.mxu0 %v505
          %526 = vmatprep.subr.bf16.mxu0 0
          %527 = vmatpush1.bf16.msra.mxu0 %v506
          %528 = vmatprep.subr.bf16.mxu0 0
          %529 = vmatpush1.bf16.msra.mxu0 %v507
          %530 = vmatprep.subr.bf16.mxu0 0
          %531 = vmatpush1.bf16.msra.mxu0 %v508
          %532 = vmatprep.subr.bf16.mxu0 0
          %533 = vmatpush1.bf16.msra.mxu0 %v509
          %534 = vmatprep.subr.bf16.mxu0 0
          %535 = vmatpush1.bf16.msra.mxu0 0
          %536 = vmatprep.subr.bf16.mxu0 0
          %537 = vmatpush1.bf16.msra.mxu0 0
          %538 = vmatprep.subr.bf16.mxu0 0
          %539 = vmatpush1.bf16.msra.mxu0 0
          %540 = vmatprep.subr.bf16.mxu0 0
          %541 = vmatpush1.bf16.msra.mxu0 0
          %542 = vmatprep.subr.bf16.mxu0 0
          %543 = vmatpush1.bf16.msra.mxu0 0
          %544 = vmatprep.subr.bf16.mxu0 0
          %545 = vmatpush1.bf16.msra.mxu0 0
          %546 = vmatprep.subr.bf16.mxu0 0
          %547 = vmatpush1.bf16.msra.mxu0 0
          %548 = vmatprep.subr.bf16.mxu0 0
          %549 = vmatpush1.bf16.msra.mxu0 0
          %550 = vmatprep.mubr.bf16.mxu0 0
          %551 = vmatmul.mubr.bf16.gmra.mrb[0].mxu0 %v468
          %v552 = vpop.f32.mrb[0].mxu0
          %v553 = vadd.f32 %v441, %v552
          %v554 = vpop.f32.mrb[0].mxu0
          %v555 = vpop.f32.mrb[0].mxu0
          %v556 = vadd.f32 %v444, %v555
          %v557 = vpop.f32.mrb[0].mxu0
          %558 = vdwg.mxu0
          %v559 = vld [vmem:[#allocation2 + $0x4] sm:$0xf]
          %v560 = vld [vmem:[#allocation2 + $0x8] sm:$0xf]
          %v561 = vld [vmem:[#allocation2 + $0xc] sm:$0x1]
          %s562 = scalar_lea.vmem %s231, 128 [#allocation4]
          %v563 = vld [vmem:[%s562] sm:$0xf]
          %v564 = vld [vmem:[%s562 + $0x4] sm:$0xf]
          %v565 = vld [vmem:[%s562 + $0x8] sm:$0xf]
          %v566 = vld [vmem:[%s562 + $0xc] sm:$0xf]
          %v567 = vld [vmem:[%s562 + $0x10] sm:$0xf]
          %v568 = vld [vmem:[%s562 + $0x14] sm:$0xf]
          %v569 = vld [vmem:[%s562 + $0x18] sm:$0xf]
          %v570 = vld [vmem:[%s562 + $0x1c] sm:$0xf]
          %v571 = vld [vmem:[%s562 + $0x20] sm:$0xf]
          %v572 = vld [vmem:[%s562 + $0x24] sm:$0xf]
          %v573 = vld [vmem:[%s562 + $0x28] sm:$0xf]
          %v574 = vld [vmem:[%s562 + $0x2c] sm:$0xf]
          %v575 = vld [vmem:[%s562 + $0x30] sm:$0xf]
          %v576 = vld [vmem:[%s562 + $0x34] sm:$0xf]
          %v577 = vld [vmem:[%s562 + $0x38] sm:$0xf]
          %v578 = vld [vmem:[%s562 + $0x3c] sm:$0xf]
          %v582 = vunpack.c.l.b16 %v559
          %v583 = vunpack.c.l.b16 %v560
          %v584 = vunpack.c.l.b16 %v561
          %v585 = vpack.c.b16 %v583, %v582
          %v586 = vpack.c.b16 %v584, %v584
          %vm587 = vsmask.f32 7424
          %v589 = vshrl.u32 %v585, 16
          %v591 = vshll.u32 %v585, 16
          %v593 = vrot.slane %v591, 1
          %v594 = vor.u32 %v589, %v593
          %v596 = vshll.u32 %v586, 16
          %v598 = vrot.slane %v596, 1
          %v599 = vsel %vm587, %v594, %v598
          %v617 = vunpack.c.l.b16 %v563
          %v618 = vunpack.c.l.b16 %v564
          %v619 = vunpack.c.l.b16 %v565
          %v620 = vunpack.c.l.b16 %v566
          %v621 = vunpack.c.l.b16 %v567
          %v622 = vunpack.c.l.b16 %v568
          %v623 = vunpack.c.l.b16 %v569
          %v624 = vunpack.c.l.b16 %v570
          %v625 = vunpack.c.l.b16 %v571
          %v626 = vunpack.c.l.b16 %v572
          %v627 = vunpack.c.l.b16 %v573
          %v628 = vunpack.c.l.b16 %v574
          %v629 = vunpack.c.l.b16 %v575
          %v630 = vunpack.c.l.b16 %v576
          %v631 = vunpack.c.l.b16 %v577
          %v632 = vunpack.c.l.b16 %v578
          %v633 = vpack.c.b16 %v618, %v617
          %v634 = vpack.c.b16 %v620, %v619
          %v635 = vpack.c.b16 %v622, %v621
          %v636 = vpack.c.b16 %v624, %v623
          %v637 = vpack.c.b16 %v626, %v625
          %v638 = vpack.c.b16 %v628, %v627
          %v639 = vpack.c.b16 %v630, %v629
          %v640 = vpack.c.b16 %v632, %v631
          %649 = vmatprep.subr.bf16.mxu0 0
          %650 = vmatpush1.bf16.msra.mxu0 %v633
          %651 = vmatprep.subr.bf16.mxu0 0
          %652 = vmatpush1.bf16.msra.mxu0 %v634
          %653 = vmatprep.subr.bf16.mxu0 0
          %654 = vmatpush1.bf16.msra.mxu0 %v635
          %655 = vmatprep.subr.bf16.mxu0 0
          %656 = vmatpush1.bf16.msra.mxu0 %v636
          %657 = vmatprep.subr.bf16.mxu0 0
          %658 = vmatpush1.bf16.msra.mxu0 %v637
          %659 = vmatprep.subr.bf16.mxu0 0
          %660 = vmatpush1.bf16.msra.mxu0 %v638
          %661 = vmatprep.subr.bf16.mxu0 0
          %662 = vmatpush1.bf16.msra.mxu0 %v639
          %663 = vmatprep.subr.bf16.mxu0 0
          %664 = vmatpush1.bf16.msra.mxu0 %v640
          %665 = vmatprep.subr.bf16.mxu0 0
          %666 = vmatpush1.bf16.msra.mxu0 0
          %667 = vmatprep.subr.bf16.mxu0 0
          %668 = vmatpush1.bf16.msra.mxu0 0
          %669 = vmatprep.subr.bf16.mxu0 0
          %670 = vmatpush1.bf16.msra.mxu0 0
          %671 = vmatprep.subr.bf16.mxu0 0
          %672 = vmatpush1.bf16.msra.mxu0 0
          %673 = vmatprep.subr.bf16.mxu0 0
          %674 = vmatpush1.bf16.msra.mxu0 0
          %675 = vmatprep.subr.bf16.mxu0 0
          %676 = vmatpush1.bf16.msra.mxu0 0
          %677 = vmatprep.subr.bf16.mxu0 0
          %678 = vmatpush1.bf16.msra.mxu0 0
          %679 = vmatprep.subr.bf16.mxu0 0
          %680 = vmatpush1.bf16.msra.mxu0 0
          %681 = vmatprep.mubr.bf16.mxu0 0
          %682 = vmatmul.mubr.bf16.gmra.mrb[0].mxu0 %v599
          %v683 = vpop.f32.mrb[0].mxu0
          %v684 = vadd.f32 0.0, %v683
          %v685 = vpop.f32.mrb[0].mxu0
          %v686 = vpop.f32.mrb[0].mxu0
          %v687 = vadd.f32 0.0, %v686
          %v688 = vpop.f32.mrb[0].mxu0
          %689 = vdwg.mxu0
          %v690 = vadd.f32 %v553, %v684
          %v691 = vadd.f32 %v556, %v687
          %v692 = vld [vmem:[%s277] sm:$0x1]
          %v694 = vlaneseq
          %v695 = vshrl.u32 %v694, 7
          %v696 = vsub.s32 0, %v695
          %v697 = vrot.slane %v692, %v696
          %v699 = vmul.f32 %v690, %v697
          %v700 = vmul.f32 %v691, %v697
          %v701 = vld [vmem:[%s281] sm:$0x1]
          %v703 = vlaneseq
          %v704 = vshrl.u32 %v703, 7
          %v705 = vsub.s32 0, %v704
          %v706 = vrot.slane %v701, %v705
          %v708 = vadd.f32 %v699, %v706
          %v709 = vadd.f32 %v700, %v706
          %v710 = vmax.f32 %v708, 0.0
          %v711 = vmax.f32 %v709, 0.0
          %712 = vst [vmem:[#allocation3] sm:$0xff] %v710
          %713 = vst [vmem:[#allocation3 + $0x8] sm:$0xff] %v711
          %p714 = scmp.lt.s32.totalorder %s26, 4
          // Predicated region
          $region45: #{tpu_custom_call.1} parent=43 // pred_check
            %p715 = pneg %p714
          $region46: #{tpu_custom_call.1} parent=43 // pred_check_branch
            %717 = sbr.rel (%p715) target = $region48
          $region47: #{tpu_custom_call.1} parent=43 // pred_region
            %v718 = vpack.c.bf16 %v711, %v710
            %v720 = vunpack.c.l.b16 %v718
            %v721 = vunpack.c.h.b16 %v718
            %v722 = vpack.c.b16 %v720, %v720
            %v723 = vpack.c.b16 %v721, %v721
            %726 = vst [vmem:[#allocation2 + $0x4] sm:$0xf] %v722
            %727 = vst [vmem:[#allocation2 + $0x8] sm:$0xf] %v723
          $region48: #{tpu_custom_call.1} parent=43 // pred_fallthru
            _
        $region44: #{tpu_custom_call.1} parent=35 // pred_fallthru
          _
        %p728 = scmp.gt.s32.totalorder %s26, 0
        // Predicated region
        $region49: #{tpu_custom_call.1} parent=35 // pred_check
          %p729 = pneg %p728
        $region50: #{tpu_custom_call.1} parent=35 // pred_check_branch
          %731 = sbr.rel (%p729) target = $region52
        $region51: #{tpu_custom_call.1} parent=35 // pred_region
          %v732 = vld [vmem:[#allocation3] sm:$0xff]
          %v733 = vld [vmem:[#allocation3 + $0x8] sm:$0xff]
          %v734 = vld [vmem:[#allocation2] sm:$0x8]
          %v735 = vld [vmem:[#allocation2 + $0x4] sm:$0xf]
          %v736 = vld [vmem:[#allocation2 + $0x8] sm:$0xf]
          %v737 = vld [vmem:[%s231] sm:$0xf]
          %v738 = vld [vmem:[%s231 + $0x4] sm:$0xf]
          %v739 = vld [vmem:[%s231 + $0x8] sm:$0xf]
          %v740 = vld [vmem:[%s231 + $0xc] sm:$0xf]
          %v741 = vld [vmem:[%s231 + $0x10] sm:$0xf]
          %v742 = vld [vmem:[%s231 + $0x14] sm:$0xf]
          %v743 = vld [vmem:[%s231 + $0x18] sm:$0xf]
          %v744 = vld [vmem:[%s231 + $0x1c] sm:$0xf]
          %v745 = vld [vmem:[%s231 + $0x20] sm:$0xf]
          %v746 = vld [vmem:[%s231 + $0x24] sm:$0xf]
          %v747 = vld [vmem:[%s231 + $0x28] sm:$0xf]
          %v748 = vld [vmem:[%s231 + $0x2c] sm:$0xf]
          %v749 = vld [vmem:[%s231 + $0x30] sm:$0xf]
          %v750 = vld [vmem:[%s231 + $0x34] sm:$0xf]
          %v751 = vld [vmem:[%s231 + $0x38] sm:$0xf]
          %v752 = vld [vmem:[%s231 + $0x3c] sm:$0xf]
          %s753 = scalar_lea.vmem %s231, 64 [#allocation4]
          %v754 = vld [vmem:[%s753] sm:$0xf]
          %v755 = vld [vmem:[%s753 + $0x4] sm:$0xf]
          %v756 = vld [vmem:[%s753 + $0x8] sm:$0xf]
          %v757 = vld [vmem:[%s753 + $0xc] sm:$0xf]
          %v758 = vld [vmem:[%s753 + $0x10] sm:$0xf]
          %v759 = vld [vmem:[%s753 + $0x14] sm:$0xf]
          %v760 = vld [vmem:[%s753 + $0x18] sm:$0xf]
          %v761 = vld [vmem:[%s753 + $0x1c] sm:$0xf]
          %v762 = vld [vmem:[%s753 + $0x20] sm:$0xf]
          %v763 = vld [vmem:[%s753 + $0x24] sm:$0xf]
          %v764 = vld [vmem:[%s753 + $0x28] sm:$0xf]
          %v765 = vld [vmem:[%s753 + $0x2c] sm:$0xf]
          %v766 = vld [vmem:[%s753 + $0x30] sm:$0xf]
          %v767 = vld [vmem:[%s753 + $0x34] sm:$0xf]
          %v768 = vld [vmem:[%s753 + $0x38] sm:$0xf]
          %v769 = vld [vmem:[%s753 + $0x3c] sm:$0xf]
          %v772 = vunpack.c.l.b16 %v735
          %v773 = vunpack.c.l.b16 %v736
          %v774 = vpack.c.b16 %v773, %v772
          %v792 = vunpack.c.l.b16 %v754
          %v793 = vunpack.c.l.b16 %v755
          %v794 = vunpack.c.l.b16 %v756
          %v795 = vunpack.c.l.b16 %v757
          %v796 = vunpack.c.l.b16 %v758
          %v797 = vunpack.c.l.b16 %v759
          %v798 = vunpack.c.l.b16 %v760
          %v799 = vunpack.c.l.b16 %v761
          %v800 = vunpack.c.l.b16 %v762
          %v801 = vunpack.c.l.b16 %v763
          %v802 = vunpack.c.l.b16 %v764
          %v803 = vunpack.c.l.b16 %v765
          %v804 = vunpack.c.l.b16 %v766
          %v805 = vunpack.c.l.b16 %v767
          %v806 = vunpack.c.l.b16 %v768
          %v807 = vunpack.c.l.b16 %v769
          %v808 = vpack.c.b16 %v793, %v792
          %v809 = vpack.c.b16 %v795, %v794
          %v810 = vpack.c.b16 %v797, %v796
          %v811 = vpack.c.b16 %v799, %v798
          %v812 = vpack.c.b16 %v801, %v800
          %v813 = vpack.c.b16 %v803, %v802
          %v814 = vpack.c.b16 %v805, %v804
          %v815 = vpack.c.b16 %v807, %v806
          %824 = vmatprep.subr.bf16.mxu0 0
          %825 = vmatpush1.bf16.msra.mxu0 %v808
          %826 = vmatprep.subr.bf16.mxu0 0
          %827 = vmatpush1.bf16.msra.mxu0 %v809
          %828 = vmatprep.subr.bf16.mxu0 0
          %829 = vmatpush1.bf16.msra.mxu0 %v810
          %830 = vmatprep.subr.bf16.mxu0 0
          %831 = vmatpush1.bf16.msra.mxu0 %v811
          %832 = vmatprep.subr.bf16.mxu0 0
          %833 = vmatpush1.bf16.msra.mxu0 %v812
          %834 = vmatprep.subr.bf16.mxu0 0
          %835 = vmatpush1.bf16.msra.mxu0 %v813
          %836 = vmatprep.subr.bf16.mxu0 0
          %837 = vmatpush1.bf16.msra.mxu0 %v814
          %838 = vmatprep.subr.bf16.mxu0 0
          %839 = vmatpush1.bf16.msra.mxu0 %v815
          %840 = vmatprep.subr.bf16.mxu0 0
          %841 = vmatpush1.bf16.msra.mxu0 0
          %842 = vmatprep.subr.bf16.mxu0 0
          %843 = vmatpush1.bf16.msra.mxu0 0
          %844 = vmatprep.subr.bf16.mxu0 0
          %845 = vmatpush1.bf16.msra.mxu0 0
          %846 = vmatprep.subr.bf16.mxu0 0
          %847 = vmatpush1.bf16.msra.mxu0 0
          %848 = vmatprep.subr.bf16.mxu0 0
          %849 = vmatpush1.bf16.msra.mxu0 0
          %850 = vmatprep.subr.bf16.mxu0 0
          %851 = vmatpush1.bf16.msra.mxu0 0
          %852 = vmatprep.subr.bf16.mxu0 0
          %853 = vmatpush1.bf16.msra.mxu0 0
          %854 = vmatprep.subr.bf16.mxu0 0
          %855 = vmatpush1.bf16.msra.mxu0 0
          %856 = vmatprep.mubr.bf16.mxu0 0
          %857 = vmatmul.mubr.bf16.gmra.mrb[0].mxu0 %v774
          %v858 = vpop.f32.mrb[0].mxu0
          %v859 = vadd.f32 0.0, %v858
          %v860 = vpop.f32.mrb[0].mxu0
          %v861 = vpop.f32.mrb[0].mxu0
          %v862 = vadd.f32 0.0, %v861
          %v863 = vpop.f32.mrb[0].mxu0
          %864 = vdwg.mxu0
          %v866 = vunpack.c.l.b16 %v734
          %v867 = vpack.c.b16 %v772, %v866
          %v868 = vpack.c.b16 %v773, %v773
          %vm869 = vsmask.f32 4352
          %v871 = vshrl.u32 %v867, 16
          %v873 = vrot.slane %v871, 3
          %v874 = vshll.u32 %v867, 16
          %v876 = vrot.slane %v874, 4
          %v877 = vor.u32 %v873, %v876
          %v879 = vshrl.u32 %v868, 16
          %v881 = vrot.slane %v879, 3
          %v882 = vshll.u32 %v868, 16
          %v884 = vrot.slane %v882, 4
          %v885 = vor.u32 %v881, %v884
          %v886 = vsel %vm869, %v877, %v885
          %v904 = vunpack.c.l.b16 %v737
          %v905 = vunpack.c.l.b16 %v738
          %v906 = vunpack.c.l.b16 %v739
          %v907 = vunpack.c.l.b16 %v740
          %v908 = vunpack.c.l.b16 %v741
          %v909 = vunpack.c.l.b16 %v742
          %v910 = vunpack.c.l.b16 %v743
          %v911 = vunpack.c.l.b16 %v744
          %v912 = vunpack.c.l.b16 %v745
          %v913 = vunpack.c.l.b16 %v746
          %v914 = vunpack.c.l.b16 %v747
          %v915 = vunpack.c.l.b16 %v748
          %v916 = vunpack.c.l.b16 %v749
          %v917 = vunpack.c.l.b16 %v750
          %v918 = vunpack.c.l.b16 %v751
          %v919 = vunpack.c.l.b16 %v752
          %v920 = vpack.c.b16 %v905, %v904
          %v921 = vpack.c.b16 %v907, %v906
          %v922 = vpack.c.b16 %v909, %v908
          %v923 = vpack.c.b16 %v911, %v910
          %v924 = vpack.c.b16 %v913, %v912
          %v925 = vpack.c.b16 %v915, %v914
          %v926 = vpack.c.b16 %v917, %v916
          %v927 = vpack.c.b16 %v919, %v918
          %936 = vmatprep.subr.bf16.mxu0 0
          %937 = vmatpush1.bf16.msra.mxu0 %v920
          %938 = vmatprep.subr.bf16.mxu0 0
          %939 = vmatpush1.bf16.msra.mxu0 %v921
          %940 = vmatprep.subr.bf16.mxu0 0
          %941 = vmatpush1.bf16.msra.mxu0 %v922
          %942 = vmatprep.subr.bf16.mxu0 0
          %943 = vmatpush1.bf16.msra.mxu0 %v923
          %944 = vmatprep.subr.bf16.mxu0 0
          %945 = vmatpush1.bf16.msra.mxu0 %v924
          %946 = vmatprep.subr.bf16.mxu0 0
          %947 = vmatpush1.bf16.msra.mxu0 %v925
          %948 = vmatprep.subr.bf16.mxu0 0
          %949 = vmatpush1.bf16.msra.mxu0 %v926
          %950 = vmatprep.subr.bf16.mxu0 0
          %951 = vmatpush1.bf16.msra.mxu0 %v927
          %952 = vmatprep.subr.bf16.mxu0 0
          %953 = vmatpush1.bf16.msra.mxu0 0
          %954 = vmatprep.subr.bf16.mxu0 0
          %955 = vmatpush1.bf16.msra.mxu0 0
          %956 = vmatprep.subr.bf16.mxu0 0
          %957 = vmatpush1.bf16.msra.mxu0 0
          %958 = vmatprep.subr.bf16.mxu0 0
          %959 = vmatpush1.bf16.msra.mxu0 0
          %960 = vmatprep.subr.bf16.mxu0 0
          %961 = vmatpush1.bf16.msra.mxu0 0
          %962 = vmatprep.subr.bf16.mxu0 0
          %963 = vmatpush1.bf16.msra.mxu0 0
          %964 = vmatprep.subr.bf16.mxu0 0
          %965 = vmatpush1.bf16.msra.mxu0 0
          %966 = vmatprep.subr.bf16.mxu0 0
          %967 = vmatpush1.bf16.msra.mxu0 0
          %968 = vmatprep.mubr.bf16.mxu0 0
          %969 = vmatmul.mubr.bf16.gmra.mrb[0].mxu0 %v886
          %v970 = vpop.f32.mrb[0].mxu0
          %v971 = vadd.f32 %v859, %v970
          %v972 = vpop.f32.mrb[0].mxu0
          %v973 = vpop.f32.mrb[0].mxu0
          %v974 = vadd.f32 %v862, %v973
          %v975 = vpop.f32.mrb[0].mxu0
          %976 = vdwg.mxu0
          %v977 = vld [vmem:[#allocation2 + $0x4] sm:$0xf]
          %v978 = vld [vmem:[#allocation2 + $0x8] sm:$0xf]
          %v979 = vld [vmem:[#allocation2 + $0xc] sm:$0x1]
          %s980 = scalar_lea.vmem %s231, 128 [#allocation4]
          %v981 = vld [vmem:[%s980] sm:$0xf]
          %v982 = vld [vmem:[%s980 + $0x4] sm:$0xf]
          %v983 = vld [vmem:[%s980 + $0x8] sm:$0xf]
          %v984 = vld [vmem:[%s980 + $0xc] sm:$0xf]
          %v985 = vld [vmem:[%s980 + $0x10] sm:$0xf]
          %v986 = vld [vmem:[%s980 + $0x14] sm:$0xf]
          %v987 = vld [vmem:[%s980 + $0x18] sm:$0xf]
          %v988 = vld [vmem:[%s980 + $0x1c] sm:$0xf]
          %v989 = vld [vmem:[%s980 + $0x20] sm:$0xf]
          %v990 = vld [vmem:[%s980 + $0x24] sm:$0xf]
          %v991 = vld [vmem:[%s980 + $0x28] sm:$0xf]
          %v992 = vld [vmem:[%s980 + $0x2c] sm:$0xf]
          %v993 = vld [vmem:[%s980 + $0x30] sm:$0xf]
          %v994 = vld [vmem:[%s980 + $0x34] sm:$0xf]
          %v995 = vld [vmem:[%s980 + $0x38] sm:$0xf]
          %v996 = vld [vmem:[%s980 + $0x3c] sm:$0xf]
          %v1000 = vunpack.c.l.b16 %v977
          %v1001 = vunpack.c.l.b16 %v978
          %v1002 = vunpack.c.l.b16 %v979
          %v1003 = vpack.c.b16 %v1001, %v1000
          %v1004 = vpack.c.b16 %v1002, %v1002
          %vm1005 = vsmask.f32 7424
          %v1007 = vshrl.u32 %v1003, 16
          %v1009 = vshll.u32 %v1003, 16
          %v1011 = vrot.slane %v1009, 1
          %v1012 = vor.u32 %v1007, %v1011
          %v1014 = vshll.u32 %v1004, 16
          %v1016 = vrot.slane %v1014, 1
          %v1017 = vsel %vm1005, %v1012, %v1016
          %v1035 = vunpack.c.l.b16 %v981
          %v1036 = vunpack.c.l.b16 %v982
          %v1037 = vunpack.c.l.b16 %v983
          %v1038 = vunpack.c.l.b16 %v984
          %v1039 = vunpack.c.l.b16 %v985
          %v1040 = vunpack.c.l.b16 %v986
          %v1041 = vunpack.c.l.b16 %v987
          %v1042 = vunpack.c.l.b16 %v988
          %v1043 = vunpack.c.l.b16 %v989
          %v1044 = vunpack.c.l.b16 %v990
          %v1045 = vunpack.c.l.b16 %v991
          %v1046 = vunpack.c.l.b16 %v992
          %v1047 = vunpack.c.l.b16 %v993
          %v1048 = vunpack.c.l.b16 %v994
          %v1049 = vunpack.c.l.b16 %v995
          %v1050 = vunpack.c.l.b16 %v996
          %v1051 = vpack.c.b16 %v1036, %v1035
          %v1052 = vpack.c.b16 %v1038, %v1037
          %v1053 = vpack.c.b16 %v1040, %v1039
          %v1054 = vpack.c.b16 %v1042, %v1041
          %v1055 = vpack.c.b16 %v1044, %v1043
          %v1056 = vpack.c.b16 %v1046, %v1045
          %v1057 = vpack.c.b16 %v1048, %v1047
          %v1058 = vpack.c.b16 %v1050, %v1049
          %1067 = vmatprep.subr.bf16.mxu0 0
          %1068 = vmatpush1.bf16.msra.mxu0 %v1051
          %1069 = vmatprep.subr.bf16.mxu0 0
          %1070 = vmatpush1.bf16.msra.mxu0 %v1052
          %1071 = vmatprep.subr.bf16.mxu0 0
          %1072 = vmatpush1.bf16.msra.mxu0 %v1053
          %1073 = vmatprep.subr.bf16.mxu0 0
          %1074 = vmatpush1.bf16.msra.mxu0 %v1054
          %1075 = vmatprep.subr.bf16.mxu0 0
          %1076 = vmatpush1.bf16.msra.mxu0 %v1055
          %1077 = vmatprep.subr.bf16.mxu0 0
          %1078 = vmatpush1.bf16.msra.mxu0 %v1056
          %1079 = vmatprep.subr.bf16.mxu0 0
          %1080 = vmatpush1.bf16.msra.mxu0 %v1057
          %1081 = vmatprep.subr.bf16.mxu0 0
          %1082 = vmatpush1.bf16.msra.mxu0 %v1058
          %1083 = vmatprep.subr.bf16.mxu0 0
          %1084 = vmatpush1.bf16.msra.mxu0 0
          %1085 = vmatprep.subr.bf16.mxu0 0
          %1086 = vmatpush1.bf16.msra.mxu0 0
          %1087 = vmatprep.subr.bf16.mxu0 0
          %1088 = vmatpush1.bf16.msra.mxu0 0
          %1089 = vmatprep.subr.bf16.mxu0 0
          %1090 = vmatpush1.bf16.msra.mxu0 0
          %1091 = vmatprep.subr.bf16.mxu0 0
          %1092 = vmatpush1.bf16.msra.mxu0 0
          %1093 = vmatprep.subr.bf16.mxu0 0
          %1094 = vmatpush1.bf16.msra.mxu0 0
          %1095 = vmatprep.subr.bf16.mxu0 0
          %1096 = vmatpush1.bf16.msra.mxu0 0
          %1097 = vmatprep.subr.bf16.mxu0 0
          %1098 = vmatpush1.bf16.msra.mxu0 0
          %1099 = vmatprep.mubr.bf16.mxu0 0
          %1100 = vmatmul.mubr.bf16.gmra.mrb[0].mxu0 %v1017
          %v1101 = vpop.f32.mrb[0].mxu0
          %v1102 = vadd.f32 0.0, %v1101
          %v1103 = vpop.f32.mrb[0].mxu0
          %v1104 = vpop.f32.mrb[0].mxu0
          %v1105 = vadd.f32 0.0, %v1104
          %v1106 = vpop.f32.mrb[0].mxu0
          %1107 = vdwg.mxu0
          %v1108 = vadd.f32 %v971, %v1102
          %v1109 = vadd.f32 %v974, %v1105
          %v1110 = vld [vmem:[%s277] sm:$0x1]
          %v1112 = vlaneseq
          %v1113 = vshrl.u32 %v1112, 7
          %v1114 = vsub.s32 0, %v1113
          %v1115 = vrot.slane %v1110, %v1114
          %v1117 = vmul.f32 %v1108, %v1115
          %v1118 = vmul.f32 %v1109, %v1115
          %v1119 = vld [vmem:[%s281] sm:$0x1]
          %v1121 = vlaneseq
          %v1122 = vshrl.u32 %v1121, 7
          %v1123 = vsub.s32 0, %v1122
          %v1124 = vrot.slane %v1119, %v1123
          %v1126 = vadd.f32 %v1117, %v1124
          %v1127 = vadd.f32 %v1118, %v1124
          %v1128 = vmax.f32 %v1126, 0.0
          %v1129 = vmax.f32 %v1127, 0.0
          %v1130 = vpack.c.bf16 %v1129, %v1128
          %v1132 = vunpack.c.l.b16 %v1130
          %v1133 = vunpack.c.h.b16 %v1130
          %v1134 = vpack.c.b16 %v1132, %v1132
          %v1135 = vpack.c.b16 %v1133, %v1133
          %1138 = vst [vmem:[#allocation2 + $0x4] sm:$0xf] %v1134
          %1139 = vst [vmem:[#allocation2 + $0x8] sm:$0xf] %v1135
          %v1140 = vld [vmem:[#allocation2] sm:$0x8]
          %v1141 = vld [vmem:[#allocation2 + $0x4] sm:$0xf]
          %v1142 = vld [vmem:[#allocation2 + $0x8] sm:$0xf]
          %s1143 = scalar_lea.vmem %s231, 192 [#allocation4]
          %v1144 = vld [vmem:[%s1143] sm:$0xf]
          %v1145 = vld [vmem:[%s1143 + $0x4] sm:$0xf]
          %v1146 = vld [vmem:[%s1143 + $0x8] sm:$0xf]
          %v1147 = vld [vmem:[%s1143 + $0xc] sm:$0xf]
          %v1148 = vld [vmem:[%s1143 + $0x10] sm:$0xf]
          %v1149 = vld [vmem:[%s1143 + $0x14] sm:$0xf]
          %v1150 = vld [vmem:[%s1143 + $0x18] sm:$0xf]
          %v1151 = vld [vmem:[%s1143 + $0x1c] sm:$0xf]
          %v1152 = vld [vmem:[%s1143 + $0x20] sm:$0xf]
          %v1153 = vld [vmem:[%s1143 + $0x24] sm:$0xf]
          %v1154 = vld [vmem:[%s1143 + $0x28] sm:$0xf]
          %v1155 = vld [vmem:[%s1143 + $0x2c] sm:$0xf]
          %v1156 = vld [vmem:[%s1143 + $0x30] sm:$0xf]
          %v1157 = vld [vmem:[%s1143 + $0x34] sm:$0xf]
          %v1158 = vld [vmem:[%s1143 + $0x38] sm:$0xf]
          %v1159 = vld [vmem:[%s1143 + $0x3c] sm:$0xf]
          %s1160 = scalar_lea.vmem %s231, 256 [#allocation4]
          %v1161 = vld [vmem:[%s1160] sm:$0xf]
          %v1162 = vld [vmem:[%s1160 + $0x4] sm:$0xf]
          %v1163 = vld [vmem:[%s1160 + $0x8] sm:$0xf]
          %v1164 = vld [vmem:[%s1160 + $0xc] sm:$0xf]
          %v1165 = vld [vmem:[%s1160 + $0x10] sm:$0xf]
          %v1166 = vld [vmem:[%s1160 + $0x14] sm:$0xf]
          %v1167 = vld [vmem:[%s1160 + $0x18] sm:$0xf]
          %v1168 = vld [vmem:[%s1160 + $0x1c] sm:$0xf]
          %v1169 = vld [vmem:[%s1160 + $0x20] sm:$0xf]
          %v1170 = vld [vmem:[%s1160 + $0x24] sm:$0xf]
          %v1171 = vld [vmem:[%s1160 + $0x28] sm:$0xf]
          %v1172 = vld [vmem:[%s1160 + $0x2c] sm:$0xf]
          %v1173 = vld [vmem:[%s1160 + $0x30] sm:$0xf]
          %v1174 = vld [vmem:[%s1160 + $0x34] sm:$0xf]
          %v1175 = vld [vmem:[%s1160 + $0x38] sm:$0xf]
          %v1176 = vld [vmem:[%s1160 + $0x3c] sm:$0xf]
          %v1179 = vunpack.c.l.b16 %v1141
          %v1180 = vunpack.c.l.b16 %v1142
          %v1181 = vpack.c.b16 %v1180, %v1179
          %v1199 = vunpack.c.l.b16 %v1161
          %v1200 = vunpack.c.l.b16 %v1162
          %v1201 = vunpack.c.l.b16 %v1163
          %v1202 = vunpack.c.l.b16 %v1164
          %v1203 = vunpack.c.l.b16 %v1165
          %v1204 = vunpack.c.l.b16 %v1166
          %v1205 = vunpack.c.l.b16 %v1167
          %v1206 = vunpack.c.l.b16 %v1168
          %v1207 = vunpack.c.l.b16 %v1169
          %v1208 = vunpack.c.l.b16 %v1170
          %v1209 = vunpack.c.l.b16 %v1171
          %v1210 = vunpack.c.l.b16 %v1172
          %v1211 = vunpack.c.l.b16 %v1173
          %v1212 = vunpack.c.l.b16 %v1174
          %v1213 = vunpack.c.l.b16 %v1175
          %v1214 = vunpack.c.l.b16 %v1176
          %v1215 = vpack.c.b16 %v1200, %v1199
          %v1216 = vpack.c.b16 %v1202, %v1201
          %v1217 = vpack.c.b16 %v1204, %v1203
          %v1218 = vpack.c.b16 %v1206, %v1205
          %v1219 = vpack.c.b16 %v1208, %v1207
          %v1220 = vpack.c.b16 %v1210, %v1209
          %v1221 = vpack.c.b16 %v1212, %v1211
          %v1222 = vpack.c.b16 %v1214, %v1213
          %1231 = vmatprep.subr.bf16.mxu0 0
          %1232 = vmatpush1.bf16.msra.mxu0 %v1215
          %1233 = vmatprep.subr.bf16.mxu0 0
          %1234 = vmatpush1.bf16.msra.mxu0 %v1216
          %1235 = vmatprep.subr.bf16.mxu0 0
          %1236 = vmatpush1.bf16.msra.mxu0 %v1217
          %1237 = vmatprep.subr.bf16.mxu0 0
          %1238 = vmatpush1.bf16.msra.mxu0 %v1218
          %1239 = vmatprep.subr.bf16.mxu0 0
          %1240 = vmatpush1.bf16.msra.mxu0 %v1219
          %1241 = vmatprep.subr.bf16.mxu0 0
          %1242 = vmatpush1.bf16.msra.mxu0 %v1220
          %1243 = vmatprep.subr.bf16.mxu0 0
          %1244 = vmatpush1.bf16.msra.mxu0 %v1221
          %1245 = vmatprep.subr.bf16.mxu0 0
          %1246 = vmatpush1.bf16.msra.mxu0 %v1222
          %1247 = vmatprep.subr.bf16.mxu0 0
          %1248 = vmatpush1.bf16.msra.mxu0 0
          %1249 = vmatprep.subr.bf16.mxu0 0
          %1250 = vmatpush1.bf16.msra.mxu0 0
          %1251 = vmatprep.subr.bf16.mxu0 0
          %1252 = vmatpush1.bf16.msra.mxu0 0
          %1253 = vmatprep.subr.bf16.mxu0 0
          %1254 = vmatpush1.bf16.msra.mxu0 0
          %1255 = vmatprep.subr.bf16.mxu0 0
          %1256 = vmatpush1.bf16.msra.mxu0 0
          %1257 = vmatprep.subr.bf16.mxu0 0
          %1258 = vmatpush1.bf16.msra.mxu0 0
          %1259 = vmatprep.subr.bf16.mxu0 0
          %1260 = vmatpush1.bf16.msra.mxu0 0
          %1261 = vmatprep.subr.bf16.mxu0 0
          %1262 = vmatpush1.bf16.msra.mxu0 0
          %1263 = vmatprep.mubr.bf16.mxu0 0
          %1264 = vmatmul.mubr.bf16.gmra.mrb[0].mxu0 %v1181
          %v1265 = vpop.f32.mrb[0].mxu0
          %v1266 = vadd.f32 0.0, %v1265
          %v1267 = vpop.f32.mrb[0].mxu0
          %v1268 = vpop.f32.mrb[0].mxu0
          %v1269 = vadd.f32 0.0, %v1268
          %v1270 = vpop.f32.mrb[0].mxu0
          %1271 = vdwg.mxu0
          %v1273 = vunpack.c.l.b16 %v1140
          %v1274 = vpack.c.b16 %v1179, %v1273
          %v1275 = vpack.c.b16 %v1180, %v1180
          %v1277 = vshrl.u32 %v1274, 16
          %v1279 = vrot.slane %v1277, 3
          %v1280 = vshll.u32 %v1274, 16
          %v1282 = vrot.slane %v1280, 4
          %v1283 = vor.u32 %v1279, %v1282
          %v1285 = vshrl.u32 %v1275, 16
          %v1287 = vrot.slane %v1285, 3
          %v1288 = vshll.u32 %v1275, 16
          %v1290 = vrot.slane %v1288, 4
          %v1291 = vor.u32 %v1287, %v1290
          %v1292 = vsel %vm869, %v1283, %v1291
          %v1310 = vunpack.c.l.b16 %v1144
          %v1311 = vunpack.c.l.b16 %v1145
          %v1312 = vunpack.c.l.b16 %v1146
          %v1313 = vunpack.c.l.b16 %v1147
          %v1314 = vunpack.c.l.b16 %v1148
          %v1315 = vunpack.c.l.b16 %v1149
          %v1316 = vunpack.c.l.b16 %v1150
          %v1317 = vunpack.c.l.b16 %v1151
          %v1318 = vunpack.c.l.b16 %v1152
          %v1319 = vunpack.c.l.b16 %v1153
          %v1320 = vunpack.c.l.b16 %v1154
          %v1321 = vunpack.c.l.b16 %v1155
          %v1322 = vunpack.c.l.b16 %v1156
          %v1323 = vunpack.c.l.b16 %v1157
          %v1324 = vunpack.c.l.b16 %v1158
          %v1325 = vunpack.c.l.b16 %v1159
          %v1326 = vpack.c.b16 %v1311, %v1310
          %v1327 = vpack.c.b16 %v1313, %v1312
          %v1328 = vpack.c.b16 %v1315, %v1314
          %v1329 = vpack.c.b16 %v1317, %v1316
          %v1330 = vpack.c.b16 %v1319, %v1318
          %v1331 = vpack.c.b16 %v1321, %v1320
          %v1332 = vpack.c.b16 %v1323, %v1322
          %v1333 = vpack.c.b16 %v1325, %v1324
          %1342 = vmatprep.subr.bf16.mxu0 0
          %1343 = vmatpush1.bf16.msra.mxu0 %v1326
          %1344 = vmatprep.subr.bf16.mxu0 0
          %1345 = vmatpush1.bf16.msra.mxu0 %v1327
          %1346 = vmatprep.subr.bf16.mxu0 0
          %1347 = vmatpush1.bf16.msra.mxu0 %v1328
          %1348 = vmatprep.subr.bf16.mxu0 0
          %1349 = vmatpush1.bf16.msra.mxu0 %v1329
          %1350 = vmatprep.subr.bf16.mxu0 0
          %1351 = vmatpush1.bf16.msra.mxu0 %v1330
          %1352 = vmatprep.subr.bf16.mxu0 0
          %1353 = vmatpush1.bf16.msra.mxu0 %v1331
          %1354 = vmatprep.subr.bf16.mxu0 0
          %1355 = vmatpush1.bf16.msra.mxu0 %v1332
          %1356 = vmatprep.subr.bf16.mxu0 0
          %1357 = vmatpush1.bf16.msra.mxu0 %v1333
          %1358 = vmatprep.subr.bf16.mxu0 0
          %1359 = vmatpush1.bf16.msra.mxu0 0
          %1360 = vmatprep.subr.bf16.mxu0 0
          %1361 = vmatpush1.bf16.msra.mxu0 0
          %1362 = vmatprep.subr.bf16.mxu0 0
          %1363 = vmatpush1.bf16.msra.mxu0 0
          %1364 = vmatprep.subr.bf16.mxu0 0
          %1365 = vmatpush1.bf16.msra.mxu0 0
          %1366 = vmatprep.subr.bf16.mxu0 0
          %1367 = vmatpush1.bf16.msra.mxu0 0
          %1368 = vmatprep.subr.bf16.mxu0 0
          %1369 = vmatpush1.bf16.msra.mxu0 0
          %1370 = vmatprep.subr.bf16.mxu0 0
          %1371 = vmatpush1.bf16.msra.mxu0 0
          %1372 = vmatprep.subr.bf16.mxu0 0
          %1373 = vmatpush1.bf16.msra.mxu0 0
          %1374 = vmatprep.mubr.bf16.mxu0 0
          %1375 = vmatmul.mubr.bf16.gmra.mrb[0].mxu0 %v1292
          %v1376 = vpop.f32.mrb[0].mxu0
          %v1377 = vadd.f32 %v1266, %v1376
          %v1378 = vpop.f32.mrb[0].mxu0
          %v1379 = vpop.f32.mrb[0].mxu0
          %v1380 = vadd.f32 %v1269, %v1379
          %v1381 = vpop.f32.mrb[0].mxu0
          %1382 = vdwg.mxu0
          %v1383 = vld [vmem:[#allocation2 + $0x4] sm:$0xf]
          %v1384 = vld [vmem:[#allocation2 + $0x8] sm:$0xf]
          %v1385 = vld [vmem:[#allocation2 + $0xc] sm:$0x1]
          %s1386 = scalar_lea.vmem %s231, 320 [#allocation4]
          %v1387 = vld [vmem:[%s1386] sm:$0xf]
          %v1388 = vld [vmem:[%s1386 + $0x4] sm:$0xf]
          %v1389 = vld [vmem:[%s1386 + $0x8] sm:$0xf]
          %v1390 = vld [vmem:[%s1386 + $0xc] sm:$0xf]
          %v1391 = vld [vmem:[%s1386 + $0x10] sm:$0xf]
          %v1392 = vld [vmem:[%s1386 + $0x14] sm:$0xf]
          %v1393 = vld [vmem:[%s1386 + $0x18] sm:$0xf]
          %v1394 = vld [vmem:[%s1386 + $0x1c] sm:$0xf]
          %v1395 = vld [vmem:[%s1386 + $0x20] sm:$0xf]
          %v1396 = vld [vmem:[%s1386 + $0x24] sm:$0xf]
          %v1397 = vld [vmem:[%s1386 + $0x28] sm:$0xf]
          %v1398 = vld [vmem:[%s1386 + $0x2c] sm:$0xf]
          %v1399 = vld [vmem:[%s1386 + $0x30] sm:$0xf]
          %v1400 = vld [vmem:[%s1386 + $0x34] sm:$0xf]
          %v1401 = vld [vmem:[%s1386 + $0x38] sm:$0xf]
          %v1402 = vld [vmem:[%s1386 + $0x3c] sm:$0xf]
          %v1406 = vunpack.c.l.b16 %v1383
          %v1407 = vunpack.c.l.b16 %v1384
          %v1408 = vunpack.c.l.b16 %v1385
          %v1409 = vpack.c.b16 %v1407, %v1406
          %v1410 = vpack.c.b16 %v1408, %v1408
          %v1412 = vshrl.u32 %v1409, 16
          %v1414 = vshll.u32 %v1409, 16
          %v1416 = vrot.slane %v1414, 1
          %v1417 = vor.u32 %v1412, %v1416
          %v1419 = vshll.u32 %v1410, 16
          %v1421 = vrot.slane %v1419, 1
          %v1422 = vsel %vm1005, %v1417, %v1421
          %v1440 = vunpack.c.l.b16 %v1387
          %v1441 = vunpack.c.l.b16 %v1388
          %v1442 = vunpack.c.l.b16 %v1389
          %v1443 = vunpack.c.l.b16 %v1390
          %v1444 = vunpack.c.l.b16 %v1391
          %v1445 = vunpack.c.l.b16 %v1392
          %v1446 = vunpack.c.l.b16 %v1393
          %v1447 = vunpack.c.l.b16 %v1394
          %v1448 = vunpack.c.l.b16 %v1395
          %v1449 = vunpack.c.l.b16 %v1396
          %v1450 = vunpack.c.l.b16 %v1397
          %v1451 = vunpack.c.l.b16 %v1398
          %v1452 = vunpack.c.l.b16 %v1399
          %v1453 = vunpack.c.l.b16 %v1400
          %v1454 = vunpack.c.l.b16 %v1401
          %v1455 = vunpack.c.l.b16 %v1402
          %v1456 = vpack.c.b16 %v1441, %v1440
          %v1457 = vpack.c.b16 %v1443, %v1442
          %v1458 = vpack.c.b16 %v1445, %v1444
          %v1459 = vpack.c.b16 %v1447, %v1446
          %v1460 = vpack.c.b16 %v1449, %v1448
          %v1461 = vpack.c.b16 %v1451, %v1450
          %v1462 = vpack.c.b16 %v1453, %v1452
          %v1463 = vpack.c.b16 %v1455, %v1454
          %1472 = vmatprep.subr.bf16.mxu0 0
          %1473 = vmatpush1.bf16.msra.mxu0 %v1456
          %1474 = vmatprep.subr.bf16.mxu0 0
          %1475 = vmatpush1.bf16.msra.mxu0 %v1457
          %1476 = vmatprep.subr.bf16.mxu0 0
          %1477 = vmatpush1.bf16.msra.mxu0 %v1458
          %1478 = vmatprep.subr.bf16.mxu0 0
          %1479 = vmatpush1.bf16.msra.mxu0 %v1459
          %1480 = vmatprep.subr.bf16.mxu0 0
          %1481 = vmatpush1.bf16.msra.mxu0 %v1460
          %1482 = vmatprep.subr.bf16.mxu0 0
          %1483 = vmatpush1.bf16.msra.mxu0 %v1461
          %1484 = vmatprep.subr.bf16.mxu0 0
          %1485 = vmatpush1.bf16.msra.mxu0 %v1462
          %1486 = vmatprep.subr.bf16.mxu0 0
          %1487 = vmatpush1.bf16.msra.mxu0 %v1463
          %1488 = vmatprep.subr.bf16.mxu0 0
          %1489 = vmatpush1.bf16.msra.mxu0 0
          %1490 = vmatprep.subr.bf16.mxu0 0
          %1491 = vmatpush1.bf16.msra.mxu0 0
          %1492 = vmatprep.subr.bf16.mxu0 0
          %1493 = vmatpush1.bf16.msra.mxu0 0
          %1494 = vmatprep.subr.bf16.mxu0 0
          %1495 = vmatpush1.bf16.msra.mxu0 0
          %1496 = vmatprep.subr.bf16.mxu0 0
          %1497 = vmatpush1.bf16.msra.mxu0 0
          %1498 = vmatprep.subr.bf16.mxu0 0
          %1499 = vmatpush1.bf16.msra.mxu0 0
          %1500 = vmatprep.subr.bf16.mxu0 0
          %1501 = vmatpush1.bf16.msra.mxu0 0
          %1502 = vmatprep.subr.bf16.mxu0 0
          %1503 = vmatpush1.bf16.msra.mxu0 0
          %1504 = vmatprep.mubr.bf16.mxu0 0
          %1505 = vmatmul.mubr.bf16.gmra.mrb[0].mxu0 %v1422
          %v1506 = vpop.f32.mrb[0].mxu0
          %v1507 = vadd.f32 0.0, %v1506
          %v1508 = vpop.f32.mrb[0].mxu0
          %v1509 = vpop.f32.mrb[0].mxu0
          %v1510 = vadd.f32 0.0, %v1509
          %v1511 = vpop.f32.mrb[0].mxu0
          %1512 = vdwg.mxu0
          %v1513 = vadd.f32 %v1377, %v1507
          %v1514 = vadd.f32 %v1380, %v1510
          %s1515 = scalar_lea.vmem %s277, 1
          %v1516 = vld [vmem:[%s1515] sm:$0x1]
          %v1518 = vlaneseq
          %v1519 = vshrl.u32 %v1518, 7
          %v1520 = vsub.s32 0, %v1519
          %v1521 = vrot.slane %v1516, %v1520
          %v1523 = vmul.f32 %v1513, %v1521
          %v1524 = vmul.f32 %v1514, %v1521
          %s1525 = scalar_lea.vmem %s281, 1
          %v1526 = vld [vmem:[%s1525] sm:$0x1]
          %v1528 = vlaneseq
          %v1529 = vshrl.u32 %v1528, 7
          %v1530 = vsub.s32 0, %v1529
          %v1531 = vrot.slane %v1526, %v1530
          %v1533 = vadd.f32 %v1523, %v1531
          %v1534 = vadd.f32 %v1524, %v1531
          %v1535 = vadd.f32 %v1533, %v732
          %v1536 = vadd.f32 %v1534, %v733
          %v1537 = vmax.f32 %v1535, 0.0
          %v1538 = vmax.f32 %v1536, 0.0
          %1539 = vst [vmem:[#allocation3] sm:$0xff] %v1537
          %1540 = vst [vmem:[#allocation3 + $0x8] sm:$0xff] %v1538
          %p1541 = scmp.lt.s32.totalorder %s26, 4
          // Predicated region
          $region53: #{tpu_custom_call.1} parent=51 // pred_check
            %p1542 = pneg %p1541
          $region54: #{tpu_custom_call.1} parent=51 // pred_check_branch
            %1544 = sbr.rel (%p1542) target = $region56
          $region55: #{tpu_custom_call.1} parent=51 // pred_region
            %v1545 = vpack.c.bf16 %v1538, %v1537
            %v1547 = vunpack.c.l.b16 %v1545
            %v1548 = vunpack.c.h.b16 %v1545
            %v1549 = vpack.c.b16 %v1547, %v1547
            %v1550 = vpack.c.b16 %v1548, %v1548
            %1553 = vst [vmem:[#allocation2 + $0x4] sm:$0xf] %v1549
            %1554 = vst [vmem:[#allocation2 + $0x8] sm:$0xf] %v1550
          $region56: #{tpu_custom_call.1} parent=51 // pred_fallthru
            _
        $region52: #{tpu_custom_call.1} parent=35 // pred_fallthru
          _
        %p1555 = scmp.eq.s32.totalorder %s26, 4
        // Predicated region
        $region57: #{tpu_custom_call.1} parent=35 // pred_check
          %p1556 = pneg %p1555
        $region58: #{tpu_custom_call.1} parent=35 // pred_check_branch
          %1558 = sbr.rel (%p1556) target = $region60
        $region59: #{tpu_custom_call.1} parent=35 // pred_region
          %v1559 = vld [vmem:[#allocation3] sm:$0xff]
          %v1560 = vld [vmem:[#allocation3 + $0x8] sm:$0xff]
          %v1561 = vpack.c.bf16 %v1560, %v1559
          %v1563 = vunpack.c.l.b16 %v1561
          %v1564 = vunpack.c.h.b16 %v1561
          %v1565 = vpack.c.b16 %v1563, %v1563
          %v1566 = vpack.c.b16 %v1564, %v1564
          %1569 = vst [vmem:[%s268] sm:$0xf] %v1565
          %1570 = vst [vmem:[%s268 + $0x4] sm:$0xf] %v1566
        $region60: #{tpu_custom_call.1} parent=35 // pred_fallthru
          _
        %s1571 = sand.u32 %s145, 1
        %s1572 = scalar_lea.sflag [#allocation6], %s1571
        %s1573 = sand.u32 %s145, 1
        %s1574 = smul.addr %s1573, 8
        %s1575 = scalar_lea.vmem [#allocation7], %s1574
        // Predicated region
        $region61: #{tpu_custom_call.1} parent=35 // pred_check
          %p1576 = pneg %p155
        $region62: #{tpu_custom_call.1} parent=35 // pred_check_branch
          %1578 = sbr.rel (%p1576) target = $region64
        $region63: #{tpu_custom_call.1} parent=35 // pred_region
          %s1580 = ssub.s32 128, 128
          %1581 = vsyncadd %s1572, %s1580
          %s1582 = smul.addr %s25, 2
          %s1583 = smul.addr %s1582, 64
          %s1584 = scalar_lea.hbm %s4, %s1583
          %s1585 = sshll.u32 %s1575, 4
          %s1586 = int_to_ptr.vmem [resolvable:$true] %s1585
          %1591 = dma.vmem_to_hbm [thread:$0]  %s1586, 128, %s1584, %s1572, 64, 64, 4
        $region64: #{tpu_custom_call.1} parent=35 // pred_fallthru
          _
      $region36: #{tpu_custom_call.1} parent=5 // pred_fallthru
        _
      %p1592 = scmp.le.s32.totalorder 2, %s16
      // Predicated region
      $region65: #{tpu_custom_call.1} parent=5 // pred_check
        %p1593 = pneg %p1592
      $region66: #{tpu_custom_call.1} parent=5 // pred_check_branch
        %1595 = sbr.rel (%p1593) target = $region68
      $region67: #{tpu_custom_call.1} parent=5 // pred_region
        %s1596 = ssub.s32 %s16, 2
        // Predicated region
        $region69: #{tpu_custom_call.1} parent=67 // pred_check
          %p1597 = pneg %p161
        $region70: #{tpu_custom_call.1} parent=67 // pred_check_branch
          %1599 = sbr.rel (%p1597) target = $region72
        $region71: #{tpu_custom_call.1} parent=67 // pred_region
          %s1600 = sand.u32 %s146, 1
          %s1601 = scalar_lea.sflag [#allocation6], %s1600
          %s1602 = sand.u32 %s146, 1
          %s1603 = smul.addr %s1602, 8
          %s1604 = scalar_lea.vmem [#allocation7], %s1603
          %1605 = dma.done %s1601, 128
        $region72: #{tpu_custom_call.1} parent=67 // pred_fallthru
          _
      $region68: #{tpu_custom_call.1} parent=5 // pred_fallthru
        _
    $region6: #{tpu_custom_call.1} parent=1 // loop_footer
      %s20 = sadd.s32 1, %s16
    $region7: #{tpu_custom_call.1} parent=1 // loop_footer_branch
      %15 = sbr.rel target = $region3
    $region8: #{tpu_custom_call.1} parent=1 // loop_exit
      _
    %1606 = vsyncpa [#allocation5], 1
    %s1607 = scalar_lea.sflag [#allocation5], 1
    %1608 = vsyncpa %s1607, 1
    %1609 = vsyncpa [#allocation6], 1
    %s1610 = scalar_lea.sflag [#allocation6], 1
    %1611 = vsyncpa %s1610, 1

</llo_original>
